<compile_context>
chip_gen: v5e
topology: v5e:2x2
jax: 0.10.0
libtpu: 0.0.40
codegen_flags: <defaults>
</compile_context>

<pallas_src>
import jax
import jax.numpy as jnp
from jax import lax
from jax.experimental import pallas as pl
from jax.experimental.pallas import tpu as pltpu

CIN, COUT, K = 1, 6, 5
KK = K * K * CIN


def _c1_kernel(p_ref, w_ref, b_ref, o_ref):
    # p_ref: (4, TB*PP8, KK)   w_ref: (KK, COUT)   b_ref: (1, COUT)   o_ref: (TB*PP8, COUT)
    w = w_ref[...]

    def conv_slab(s):  # conv outputs for pool-window offset s (s = dy*2 + dx)
        return jnp.dot(p_ref[s], w, preferred_element_type=jnp.float32)

    # 2x2 / stride-2 max pool == elementwise max over the 4 offset slabs (3 maxima).
    m = jnp.maximum(jnp.maximum(conv_slab(0), conv_slab(1)),
                    jnp.maximum(conv_slab(2), conv_slab(3)))
    # bias (constant shift) and ReLU (monotone) commute with the max -> apply once,
    # then a single lane-contiguous full-block store.
    o_ref[...] = jnp.maximum(m + b_ref[...], 0.0)


def _pick_tb(n):
    """Images per grid step: keep >= 2 grid steps (v7x has 2 TensorCores) while batching
    enough rows per step to fill MXU passes; cap TB to keep the double-buffered VMEM
    footprint small on all generations."""
    if n <= 1:
        return 1
    return max(1, min(32, n // 2))


def c1_forward(img_nchw, w_pt, b_pt):
    """img_nchw: (N, 1, H, W) f32; w_pt: (6, 1, 5, 5) (PyTorch OIHW); b_pt: (6,)."""
    n, cin, h, w = img_nchw.shape
    assert cin == CIN
    oh, ow = h - K + 1, w - K + 1
    ph, pw = oh // 2, ow // 2
    assert ph >= 1 and pw >= 1
    pp = ph * pw
    pp8 = ((pp + 7) // 8) * 8          # sublane-align the pooled-row axis

    tb = _pick_tb(n)
    n_pad = pl.cdiv(n, tb) * tb

    # --- glue (plain JAX): NCHW -> NHWC -> pool-offset-ordered im2col -----------------
    x = jnp.transpose(img_nchw, (0, 2, 3, 1)).astype(jnp.float32)      # (N, H, W, CIN)
    slabs = []
    for dy in range(2):
        for dx in range(2):
            cols = []
            for kh in range(K):
                for kw in range(K):
                    y0, x0 = dy + kh, dx + kw
                    # input pixel (2i+dy+kh, 2j+dx+kw) for every pooled position (i, j)
                    cols.append(x[:, y0:y0 + 2 * ph:2, x0:x0 + 2 * pw:2, :])  # (N,ph,pw,CIN)
            # column order (kh, kw, cin) matches the weight reshape below
            slabs.append(jnp.concatenate(cols, axis=-1).reshape(n, pp, KK))
    patches = jnp.stack(slabs, axis=0)                                 # (4, N, PP, KK)
    patches = jnp.pad(patches, ((0, 0), (0, n_pad - n), (0, pp8 - pp), (0, 0)))
    patches = patches.reshape(4, n_pad * pp8, KK)

    # PyTorch weight (Cout, Cin, KH, KW) -> (KH, KW, Cin, Cout) -> (K*K*Cin, Cout)
    w_mat = jnp.transpose(w_pt, (2, 3, 1, 0)).reshape(KK, COUT).astype(jnp.float32)
    b_mat = b_pt.reshape(1, COUT).astype(jnp.float32)

    rows = tb * pp8   # second-minor block dim; pp8 % 8 == 0 keeps it sublane aligned
    out_flat = pl.pallas_call(
        _c1_kernel,
        out_shape=jax.ShapeDtypeStruct((n_pad * pp8, COUT), jnp.float32),
        grid_spec=pltpu.PrefetchScalarGridSpec(
            num_scalar_prefetch=0,
            grid=(n_pad // tb,),   # >= 2 steps for n >= 2 -> both v7x TCs busy
            in_specs=[
                pl.BlockSpec((4, rows, KK), lambda b: (0, b, 0)),
                pl.BlockSpec((KK, COUT), lambda b: (0, 0)),
                pl.BlockSpec((1, COUT), lambda b: (0, 0)),
            ],
            out_specs=pl.BlockSpec((rows, COUT), lambda b: (b, 0)),
        ),
        compiler_params=pltpu.CompilerParams(dimension_semantics=("parallel",)),
    )(patches, w_mat, b_mat)

    out = out_flat.reshape(n_pad, pp8, COUT)[:n, :pp]                  # drop padding
    return jnp.transpose(out.reshape(n, ph, pw, COUT), (0, 3, 1, 2))   # NCHW


def c1_reference(img, w_pt, b_pt):
    conv = lax.conv_general_dilated(img, w_pt, window_strides=(1, 1), padding="VALID",
                                    dimension_numbers=("NCHW", "OIHW", "NCHW"))
    conv = jnp.maximum(conv + b_pt[None, :, None, None], 0.0)
    return lax.reduce_window(conv, -jnp.inf, lax.max, (1, 1, 2, 2), (1, 1, 2, 2), "VALID")


if __name__ == "__main__":
    key = jax.random.PRNGKey(0)
    k_img, k_w, k_b = jax.random.split(key, 3)

    # Classic LeNet C1 input: (N, 1, 32, 32) -> conv (N,6,28,28) -> pool (N,6,14,14)
    N, H, W = 4, 32, 32
    img = jax.random.normal(k_img, (N, CIN, H, W), dtype=jnp.float32)

    # Deterministic parameter init mimicking PyTorch Conv2d default (uniform +- 1/sqrt(fan_in)).
    fan_in = CIN * K * K
    bound = 1.0 / (fan_in ** 0.5)
    w_pt = jax.random.uniform(k_w, (COUT, CIN, K, K), minval=-bound, maxval=bound, dtype=jnp.float32)
    b_pt = jax.random.uniform(k_b, (COUT,), minval=-bound, maxval=bound, dtype=jnp.float32)

    out = jax.block_until_ready(c1_forward(img, w_pt, b_pt))

    ref = c1_reference(img, w_pt, b_pt)
    assert out.shape == ref.shape == (N, COUT, 14, 14)
    assert jnp.allclose(out, ref, atol=1e-4, rtol=1e-4)
    print("KERNEL_OK")
</pallas_src>

<mosaic_0001>
module attributes {stable_mosaic.version = 11 : i64} {
  func.func @_c1_kernel(%arg0: i32, %arg1: memref<4x400x25xf32, #tpu.memory_space<vmem>>, %arg2: memref<25x6xf32, #tpu.memory_space<vmem>>, %arg3: memref<1x6xf32, #tpu.memory_space<vmem>>, %arg4: memref<400x6xf32, #tpu.memory_space<vmem>>) attributes {dimension_semantics = [#tpu.dimension_semantics<parallel>], iteration_bounds = array<i64: 2>, scalar_prefetch = 0 : i64, scratch_operands = 0 : i64, tpu.core_type = #tpu.core_type<tc>, window_params = [{transform_indices = @transform_0, window_bounds = array<i64: 4, 400, 25>}, {pipeline_mode = #tpu.pipeline_mode<synchronous>, transform_indices = @transform_1, window_bounds = array<i64: 25, 6>}, {pipeline_mode = #tpu.pipeline_mode<synchronous>, transform_indices = @transform_2, window_bounds = array<i64: 1, 6>}, {transform_indices = @transform_3, window_bounds = array<i64: 400, 6>}]} {
    %c0 = arith.constant 0 : index
    %c0_0 = arith.constant 0 : index
    %0 = vector.load %arg2[%c0, %c0_0] : memref<25x6xf32, #tpu.memory_space<vmem>>, vector<25x6xf32>
    %c0_1 = arith.constant 0 : index
    %c0_2 = arith.constant 0 : index
    %c0_3 = arith.constant 0 : index
    %1 = vector.load %arg1[%c0_1, %c0_2, %c0_3] : memref<4x400x25xf32, #tpu.memory_space<vmem>>, vector<1x400x25xf32>
    %2 = vector.shape_cast %1 : vector<1x400x25xf32> to vector<400x25xf32>
    %cst = arith.constant dense<0.000000e+00> : vector<400x6xf32>
    %3 = tpu.matmul %2, %0, %cst {dimension_numbers = #tpu.dot_dimension_numbers<[1], [0], [0], [1], [0, 0, 1, 1], [], []>} : vector<400x25xf32>, vector<25x6xf32>, vector<400x6xf32> -> vector<400x6xf32>
    %c1 = arith.constant 1 : index
    %c0_4 = arith.constant 0 : index
    %c0_5 = arith.constant 0 : index
    %4 = vector.load %arg1[%c1, %c0_4, %c0_5] : memref<4x400x25xf32, #tpu.memory_space<vmem>>, vector<1x400x25xf32>
    %5 = vector.shape_cast %4 : vector<1x400x25xf32> to vector<400x25xf32>
    %cst_6 = arith.constant dense<0.000000e+00> : vector<400x6xf32>
    %6 = tpu.matmul %5, %0, %cst_6 {dimension_numbers = #tpu.dot_dimension_numbers<[1], [0], [0], [1], [0, 0, 1, 1], [], []>} : vector<400x25xf32>, vector<25x6xf32>, vector<400x6xf32> -> vector<400x6xf32>
    %7 = arith.maximumf %3, %6 : vector<400x6xf32>
    %c2 = arith.constant 2 : index
    %c0_7 = arith.constant 0 : index
    %c0_8 = arith.constant 0 : index
    %8 = vector.load %arg1[%c2, %c0_7, %c0_8] : memref<4x400x25xf32, #tpu.memory_space<vmem>>, vector<1x400x25xf32>
    %9 = vector.shape_cast %8 : vector<1x400x25xf32> to vector<400x25xf32>
    %cst_9 = arith.constant dense<0.000000e+00> : vector<400x6xf32>
    %10 = tpu.matmul %9, %0, %cst_9 {dimension_numbers = #tpu.dot_dimension_numbers<[1], [0], [0], [1], [0, 0, 1, 1], [], []>} : vector<400x25xf32>, vector<25x6xf32>, vector<400x6xf32> -> vector<400x6xf32>
    %c3 = arith.constant 3 : index
    %c0_10 = arith.constant 0 : index
    %c0_11 = arith.constant 0 : index
    %11 = vector.load %arg1[%c3, %c0_10, %c0_11] : memref<4x400x25xf32, #tpu.memory_space<vmem>>, vector<1x400x25xf32>
    %12 = vector.shape_cast %11 : vector<1x400x25xf32> to vector<400x25xf32>
    %cst_12 = arith.constant dense<0.000000e+00> : vector<400x6xf32>
    %13 = tpu.matmul %12, %0, %cst_12 {dimension_numbers = #tpu.dot_dimension_numbers<[1], [0], [0], [1], [0, 0, 1, 1], [], []>} : vector<400x25xf32>, vector<25x6xf32>, vector<400x6xf32> -> vector<400x6xf32>
    %14 = arith.maximumf %10, %13 : vector<400x6xf32>
    %15 = arith.maximumf %7, %14 : vector<400x6xf32>
    %c0_13 = arith.constant 0 : index
    %c0_14 = arith.constant 0 : index
    %16 = vector.load %arg3[%c0_13, %c0_14] : memref<1x6xf32, #tpu.memory_space<vmem>>, vector<1x6xf32>
    %17 = vector.broadcast %16 : vector<1x6xf32> to vector<400x6xf32>
    %18 = arith.addf %15, %17 : vector<400x6xf32>
    %cst_15 = arith.constant 0.000000e+00 : f32
    %19 = vector.broadcast %cst_15 : f32 to vector<400x6xf32>
    %20 = arith.maximumf %18, %19 : vector<400x6xf32>
    %c0_16 = arith.constant 0 : index
    %c0_17 = arith.constant 0 : index
    %21 = vector.load %arg4[%c0_16, %c0_17] : memref<400x6xf32, #tpu.memory_space<vmem>>, vector<400x6xf32>
    tpu.vector_store %arg4[%c0_16, %c0_17], %20 {strides = array<i32>} : memref<400x6xf32, #tpu.memory_space<vmem>>, vector<400x6xf32>,
    return
  }
  func.func @transform_0(%arg0: i32) -> (i32, i32, i32) {
    %c0_i32 = arith.constant 0 : i32
    %c0_i32_0 = arith.constant 0 : i32
    %c0_i32_1 = arith.constant 0 : i32
    return %c0_i32, %arg0, %c0_i32_0 : i32, i32, i32
  }
  func.func @transform_1(%arg0: i32) -> (i32, i32) {
    %c0_i32 = arith.constant 0 : i32
    %c0_i32_0 = arith.constant 0 : i32
    %c0_i32_1 = arith.constant 0 : i32
    return %c0_i32, %c0_i32_0 : i32, i32
  }
  func.func @transform_2(%arg0: i32) -> (i32, i32) {
    %c0_i32 = arith.constant 0 : i32
    %c0_i32_0 = arith.constant 0 : i32
    %c0_i32_1 = arith.constant 0 : i32
    return %c0_i32, %c0_i32_0 : i32, i32
  }
  func.func @transform_3(%arg0: i32) -> (i32, i32) {
    %c0_i32 = arith.constant 0 : i32
    %c0_i32_0 = arith.constant 0 : i32
    return %arg0, %c0_i32 : i32, i32
  }
}

</mosaic_0001>

<llo_original>
// kernel: tpu_custom_call.1
$region0: #{tpu_custom_call.1}
  #allocation0 [shape = 'u32[]', space=smem, size = 0x4, offset = 0x4, fixed_abs, tag = 'smem constant byte address 0x4 - core index']
  #allocation1 [shape = 'u32[72,128]{1,0:T(1,128)}', space=vmem, size = 0x9000, scoped, tag = 'internal scratch']
  %s0 = inlined_call_operand.vmem [shape: f32[4,800,25], index: 0, kind: input, shape index: {}]
  %s1 = inlined_call_operand.vmem [shape: f32[25,6], index: 1, kind: input, shape index: {}]
  %s2 = inlined_call_operand.vmem [shape: f32[1,6], index: 2, kind: input, shape index: {}]
  %s3 = inlined_call_operand.vmem [shape: f32[800,6], index: 3, kind: output, shape index: {}]
  %s4 = sld [smem:[#allocation0]]
  $region83: #{tpu_custom_call.1} parent=0
    _
  %s6 = ssub.s32 1, %s4
  %s7 = scalar_select 0, %s6, %s4
  $region1: #{tpu_custom_call.1} parent=0
    #allocation2 [shape = 'u8[1638400]{0}', space=vmem, size = 0x190000, scoped, tag = 'input window, operand 0']
    loop: start=0, step=1, limit=4
    $region2: #{tpu_custom_call.1} parent=1 // loop_pre_header
      _
    $region3: #{tpu_custom_call.1} parent=1 // loop_header
      %s9 = sphi 0, %s13
      %p10 = scmp.ge.s32.totalorder %s9, 4
      %s19 = sphi 0, %s21
      %s22 = sphi 0, %s19
      %s23 = sphi 0, %s22
      %s39 = sphi 0, %s23
      %s43 = sphi 0, %s43
      %s45 = sphi 0, %s43
      %s46 = sphi 0, %s45
      %s60 = sphi 0, %s46
      %s64 = sphi 0, %s64
      %s66 = sphi 0, %s64
      %s67 = sphi 0, %s66
      %s81 = sphi 0, %s67
      %s87 = sphi 0, %s89
      %s90 = sphi 0, %s87
      %s91 = sphi 0, %s90
      %s107 = sphi 0, %s91
    $region4: #{tpu_custom_call.1} parent=1 // loop_header_branch
      %12 = sbr.rel (%p10) target = $region8
    $region5: #{tpu_custom_call.1} parent=1 // loop_body
      %s14 = ssub.s32 %s9, 1
      %s15 = ssub.s32 %s9, 2
      %s16 = sadd.s32 %s9, 1
      %s17 = ssub.s32 %s9, %s16
      %p18 = scmp.eq.s32.totalorder %s17, 0
      %s20 = sadd.s32 %s19, 1
      %s21 = scalar_select %p18, %s19, %s20
      %p24 = pneg %p18
      %p25 = scmp.eq.s32.totalorder %s9, 1
      %p26 = por %p24, %p25
      %p27 = scmp.ne.s32.totalorder %s19, %s22
      %p28 = scmp.eq.s32.totalorder %s9, 0
      %p29 = por %p27, %p28
      %p30 = scmp.ne.s32.totalorder %s19, %s22
      %p31 = scmp.eq.s32.totalorder %s14, 1
      %p32 = por %p30, %p31
      %p33 = scmp.ne.s32.totalorder %s22, %s23
      %p34 = scmp.eq.s32.totalorder %s14, 0
      %p35 = por %p33, %p34
      %p36 = scmp.ne.s32.totalorder %s22, %s23
      %p37 = scmp.eq.s32.totalorder %s15, 1
      %p38 = por %p36, %p37
      %p40 = scmp.ne.s32.totalorder %s23, %s39
      %p41 = scmp.eq.s32.totalorder %s15, 0
      %p42 = por %p40, %p41
      %s44 = sadd.s32 %s43, 1
      %p47 = scmp.eq.s32.totalorder %s9, 1
      %p48 = scmp.ne.s32.totalorder %s43, %s45
      %p49 = scmp.eq.s32.totalorder %s9, 0
      %p50 = por %p48, %p49
      %p51 = scmp.ne.s32.totalorder %s43, %s45
      %p52 = scmp.eq.s32.totalorder %s14, 1
      %p53 = por %p51, %p52
      %p54 = scmp.ne.s32.totalorder %s45, %s46
      %p55 = scmp.eq.s32.totalorder %s14, 0
      %p56 = por %p54, %p55
      %p57 = scmp.ne.s32.totalorder %s45, %s46
      %p58 = scmp.eq.s32.totalorder %s15, 1
      %p59 = por %p57, %p58
      %p61 = scmp.ne.s32.totalorder %s46, %s60
      %p62 = scmp.eq.s32.totalorder %s15, 0
      %p63 = por %p61, %p62
      %s65 = sadd.s32 %s64, 1
      %p68 = scmp.eq.s32.totalorder %s9, 1
      %p69 = scmp.ne.s32.totalorder %s64, %s66
      %p70 = scmp.eq.s32.totalorder %s9, 0
      %p71 = por %p69, %p70
      %p72 = scmp.ne.s32.totalorder %s64, %s66
      %p73 = scmp.eq.s32.totalorder %s14, 1
      %p74 = por %p72, %p73
      %p75 = scmp.ne.s32.totalorder %s66, %s67
      %p76 = scmp.eq.s32.totalorder %s14, 0
      %p77 = por %p75, %p76
      %p78 = scmp.ne.s32.totalorder %s66, %s67
      %p79 = scmp.eq.s32.totalorder %s15, 1
      %p80 = por %p78, %p79
      %p82 = scmp.ne.s32.totalorder %s67, %s81
      %p83 = scmp.eq.s32.totalorder %s15, 0
      %p84 = por %p82, %p83
      %s85 = ssub.s32 %s9, %s16
      %p86 = scmp.eq.s32.totalorder %s85, 0
      %s88 = sadd.s32 %s87, 1
      %s89 = scalar_select %p86, %s87, %s88
      %p92 = pneg %p86
      %p93 = scmp.eq.s32.totalorder %s9, 1
      %p94 = por %p92, %p93
      %p95 = scmp.ne.s32.totalorder %s87, %s90
      %p96 = scmp.eq.s32.totalorder %s9, 0
      %p97 = por %p95, %p96
      %p98 = scmp.ne.s32.totalorder %s87, %s90
      %p99 = scmp.eq.s32.totalorder %s14, 1
      %p100 = por %p98, %p99
      %p101 = scmp.ne.s32.totalorder %s90, %s91
      %p102 = scmp.eq.s32.totalorder %s14, 0
      %p103 = por %p101, %p102
      %p104 = scmp.ne.s32.totalorder %s90, %s91
      %p105 = scmp.eq.s32.totalorder %s15, 1
      %p106 = por %p104, %p105
      %p108 = scmp.ne.s32.totalorder %s91, %s107
      %p109 = scmp.eq.s32.totalorder %s15, 0
      %p110 = por %p108, %p109
      %p111 = scmp.le.s32.totalorder 1, %s9
      %p112 = scmp.lt.s32.totalorder %s9, 3
      %p113 = pnand %p111, %p112
      %p114 = pneg %p113
      // Predicated region
      $region9: #{tpu_custom_call.1} parent=5 // pred_check
        _
      $region10: #{tpu_custom_call.1} parent=5 // pred_check_branch
        %116 = sbr.rel (%p113) target = $region12
      $region11: #{tpu_custom_call.1} parent=5 // pred_region
        %s117 = ssub.s32 %s9, 1
        // Predicated region
        $region13: #{tpu_custom_call.1} parent=11 // pred_check
          %p118 = pneg %p56
        $region14: #{tpu_custom_call.1} parent=11 // pred_check_branch
          %120 = sbr.rel (%p118) target = $region16
        $region15: #{tpu_custom_call.1} parent=11 // pred_region
          _
        $region16: #{tpu_custom_call.1} parent=11 // pred_fallthru
          _
        // Predicated region
        $region17: #{tpu_custom_call.1} parent=11 // pred_check
          %p121 = pneg %p77
        $region18: #{tpu_custom_call.1} parent=11 // pred_check_branch
          %123 = sbr.rel (%p121) target = $region20
        $region19: #{tpu_custom_call.1} parent=11 // pred_region
          _
        $region20: #{tpu_custom_call.1} parent=11 // pred_fallthru
          _
      $region12: #{tpu_custom_call.1} parent=5 // pred_fallthru
        _
      %p124 = scmp.lt.s32.totalorder %s9, 2
      // Predicated region
      $region21: #{tpu_custom_call.1} parent=5 // pred_check
        %p125 = pneg %p124
      $region22: #{tpu_custom_call.1} parent=5 // pred_check_branch
        %127 = sbr.rel (%p125) target = $region24
      $region23: #{tpu_custom_call.1} parent=5 // pred_region
        // Predicated region
        $region25: #{tpu_custom_call.1} parent=23 // pred_check
          %p128 = pneg %p29
        $region26: #{tpu_custom_call.1} parent=23 // pred_check_branch
          %130 = sbr.rel (%p128) target = $region28
        $region27: #{tpu_custom_call.1} parent=23 // pred_region
          %s131 = sand.u32 %s19, 1
          %s132 = sand.u32 %s19, 1
          %s133 = smul.addr %s132, 1600
          %s134 = scalar_lea.vmem [#allocation2], %s133
          %s135 = smul.u32 50, %s9
          %s136 = smul.addr %s135, 8
          %s137 = scalar_lea.vmem %s0, %s136
          // Predicated region
          $region29: #{tpu_custom_call.1} parent=27 // pred_check
            _
          $region30: #{tpu_custom_call.1} parent=27 // pred_check_branch
            %139 = sbr.rel (0) target = $region32
          $region31: #{tpu_custom_call.1} parent=27 // pred_region
            // Predicated region
            $region33: #{tpu_custom_call.1} parent=31 // pred_check
              _
            $region34: #{tpu_custom_call.1} parent=31 // pred_check_branch
              %141 = sbr.rel (0) target = $region36
            $region35: #{tpu_custom_call.1} parent=31 // pred_region
              // Predicated region
              $region48: #{tpu_custom_call.1} parent=35 // pred_check
                _
              $region49: #{tpu_custom_call.1} parent=35 // pred_check_branch
                %555 = sbr.rel (0) target = $region51
              $region50: #{tpu_custom_call.1} parent=35 // pred_region
                loop: start=0, step=1, limit=1
                $region52: #{tpu_custom_call.1} parent=50 // loop_pre_header
                  _
                $region53: #{tpu_custom_call.1} parent=50 // loop_header
                  %s557 = sphi 0, %s561
                  %p558 = scmp.ge.s32.totalorder %s557, 1
                  %s562 = sphi %s137, %s137
                  %s563 = sphi %s134, %s134
                $region54: #{tpu_custom_call.1} parent=50 // loop_header_branch
                  %560 = sbr.rel (%p558) target = $region58
                $region55: #{tpu_custom_call.1} parent=50 // loop_body
                  %v564 = vld [vmem:[%s562] sm:$0xff]
                  %565 = vst [vmem:[%s563] sm:$0xff] %v564
                  %v566 = vld [vmem:[%s562 + $0x8] sm:$0xff]
                  %567 = vst [vmem:[%s563 + $0x8] sm:$0xff] %v566
                  %v568 = vld [vmem:[%s562 + $0x10] sm:$0xff]
                  %569 = vst [vmem:[%s563 + $0x10] sm:$0xff] %v568
                  %v570 = vld [vmem:[%s562 + $0x18] sm:$0xff]
                  %571 = vst [vmem:[%s563 + $0x18] sm:$0xff] %v570
                  %v572 = vld [vmem:[%s562 + $0x20] sm:$0xff]
                  %573 = vst [vmem:[%s563 + $0x20] sm:$0xff] %v572
                  %v574 = vld [vmem:[%s562 + $0x28] sm:$0xff]
                  %575 = vst [vmem:[%s563 + $0x28] sm:$0xff] %v574
                  %v576 = vld [vmem:[%s562 + $0x30] sm:$0xff]
                  %577 = vst [vmem:[%s563 + $0x30] sm:$0xff] %v576
                  %v578 = vld [vmem:[%s562 + $0x38] sm:$0xff]
                  %579 = vst [vmem:[%s563 + $0x38] sm:$0xff] %v578
                  %v580 = vld [vmem:[%s562 + $0x40] sm:$0xff]
                  %581 = vst [vmem:[%s563 + $0x40] sm:$0xff] %v580
                  %v582 = vld [vmem:[%s562 + $0x48] sm:$0xff]
                  %583 = vst [vmem:[%s563 + $0x48] sm:$0xff] %v582
                  %v584 = vld [vmem:[%s562 + $0x50] sm:$0xff]
                  %585 = vst [vmem:[%s563 + $0x50] sm:$0xff] %v584
                  %v586 = vld [vmem:[%s562 + $0x58] sm:$0xff]
                  %587 = vst [vmem:[%s563 + $0x58] sm:$0xff] %v586
                  %v588 = vld [vmem:[%s562 + $0x60] sm:$0xff]
                  %589 = vst [vmem:[%s563 + $0x60] sm:$0xff] %v588
                  %v590 = vld [vmem:[%s562 + $0x68] sm:$0xff]
                  %591 = vst [vmem:[%s563 + $0x68] sm:$0xff] %v590
                  %v592 = vld [vmem:[%s562 + $0x70] sm:$0xff]
                  %593 = vst [vmem:[%s563 + $0x70] sm:$0xff] %v592
                  %v594 = vld [vmem:[%s562 + $0x78] sm:$0xff]
                  %595 = vst [vmem:[%s563 + $0x78] sm:$0xff] %v594
                  %v596 = vld [vmem:[%s562 + $0x80] sm:$0xff]
                  %597 = vst [vmem:[%s563 + $0x80] sm:$0xff] %v596
                  %v598 = vld [vmem:[%s562 + $0x88] sm:$0xff]
                  %599 = vst [vmem:[%s563 + $0x88] sm:$0xff] %v598
                  %v600 = vld [vmem:[%s562 + $0x90] sm:$0xff]
                  %601 = vst [vmem:[%s563 + $0x90] sm:$0xff] %v600
                  %v602 = vld [vmem:[%s562 + $0x98] sm:$0xff]
                  %603 = vst [vmem:[%s563 + $0x98] sm:$0xff] %v602
                  %v604 = vld [vmem:[%s562 + $0xa0] sm:$0xff]
                  %605 = vst [vmem:[%s563 + $0xa0] sm:$0xff] %v604
                  %v606 = vld [vmem:[%s562 + $0xa8] sm:$0xff]
                  %607 = vst [vmem:[%s563 + $0xa8] sm:$0xff] %v606
                  %v608 = vld [vmem:[%s562 + $0xb0] sm:$0xff]
                  %609 = vst [vmem:[%s563 + $0xb0] sm:$0xff] %v608
                  %v610 = vld [vmem:[%s562 + $0xb8] sm:$0xff]
                  %611 = vst [vmem:[%s563 + $0xb8] sm:$0xff] %v610
                  %v612 = vld [vmem:[%s562 + $0xc0] sm:$0xff]
                  %613 = vst [vmem:[%s563 + $0xc0] sm:$0xff] %v612
                  %v614 = vld [vmem:[%s562 + $0xc8] sm:$0xff]
                  %615 = vst [vmem:[%s563 + $0xc8] sm:$0xff] %v614
                  %v616 = vld [vmem:[%s562 + $0xd0] sm:$0xff]
                  %617 = vst [vmem:[%s563 + $0xd0] sm:$0xff] %v616
                  %v618 = vld [vmem:[%s562 + $0xd8] sm:$0xff]
                  %619 = vst [vmem:[%s563 + $0xd8] sm:$0xff] %v618
                  %v620 = vld [vmem:[%s562 + $0xe0] sm:$0xff]
                  %621 = vst [vmem:[%s563 + $0xe0] sm:$0xff] %v620
                  %v622 = vld [vmem:[%s562 + $0xe8] sm:$0xff]
                  %623 = vst [vmem:[%s563 + $0xe8] sm:$0xff] %v622
                  %v624 = vld [vmem:[%s562 + $0xf0] sm:$0xff]
                  %625 = vst [vmem:[%s563 + $0xf0] sm:$0xff] %v624
                  %v626 = vld [vmem:[%s562 + $0xf8] sm:$0xff]
                  %627 = vst [vmem:[%s563 + $0xf8] sm:$0xff] %v626
                  %v628 = vld [vmem:[%s562 + $0x100] sm:$0xff]
                  %629 = vst [vmem:[%s563 + $0x100] sm:$0xff] %v628
                  %v630 = vld [vmem:[%s562 + $0x108] sm:$0xff]
                  %631 = vst [vmem:[%s563 + $0x108] sm:$0xff] %v630
                  %v632 = vld [vmem:[%s562 + $0x110] sm:$0xff]
                  %633 = vst [vmem:[%s563 + $0x110] sm:$0xff] %v632
                  %v634 = vld [vmem:[%s562 + $0x118] sm:$0xff]
                  %635 = vst [vmem:[%s563 + $0x118] sm:$0xff] %v634
                  %v636 = vld [vmem:[%s562 + $0x120] sm:$0xff]
                  %637 = vst [vmem:[%s563 + $0x120] sm:$0xff] %v636
                  %v638 = vld [vmem:[%s562 + $0x128] sm:$0xff]
                  %639 = vst [vmem:[%s563 + $0x128] sm:$0xff] %v638
                  %v640 = vld [vmem:[%s562 + $0x130] sm:$0xff]
                  %641 = vst [vmem:[%s563 + $0x130] sm:$0xff] %v640
                  %v642 = vld [vmem:[%s562 + $0x138] sm:$0xff]
                  %643 = vst [vmem:[%s563 + $0x138] sm:$0xff] %v642
                  %v644 = vld [vmem:[%s562 + $0x140] sm:$0xff]
                  %645 = vst [vmem:[%s563 + $0x140] sm:$0xff] %v644
                  %v646 = vld [vmem:[%s562 + $0x148] sm:$0xff]
                  %647 = vst [vmem:[%s563 + $0x148] sm:$0xff] %v646
                  %v648 = vld [vmem:[%s562 + $0x150] sm:$0xff]
                  %649 = vst [vmem:[%s563 + $0x150] sm:$0xff] %v648
                  %v650 = vld [vmem:[%s562 + $0x158] sm:$0xff]
                  %651 = vst [vmem:[%s563 + $0x158] sm:$0xff] %v650
                  %v652 = vld [vmem:[%s562 + $0x160] sm:$0xff]
                  %653 = vst [vmem:[%s563 + $0x160] sm:$0xff] %v652
                  %v654 = vld [vmem:[%s562 + $0x168] sm:$0xff]
                  %655 = vst [vmem:[%s563 + $0x168] sm:$0xff] %v654
                  %v656 = vld [vmem:[%s562 + $0x170] sm:$0xff]
                  %657 = vst [vmem:[%s563 + $0x170] sm:$0xff] %v656
                  %v658 = vld [vmem:[%s562 + $0x178] sm:$0xff]
                  %659 = vst [vmem:[%s563 + $0x178] sm:$0xff] %v658
                  %v660 = vld [vmem:[%s562 + $0x180] sm:$0xff]
                  %661 = vst [vmem:[%s563 + $0x180] sm:$0xff] %v660
                  %v662 = vld [vmem:[%s562 + $0x188] sm:$0xff]
                  %663 = vst [vmem:[%s563 + $0x188] sm:$0xff] %v662
                  %v664 = vld [vmem:[%s562 + $0x320] sm:$0xff]
                  %665 = vst [vmem:[%s563 + $0x190] sm:$0xff] %v664
                  %v666 = vld [vmem:[%s562 + $0x328] sm:$0xff]
                  %667 = vst [vmem:[%s563 + $0x198] sm:$0xff] %v666
                  %v668 = vld [vmem:[%s562 + $0x330] sm:$0xff]
                  %669 = vst [vmem:[%s563 + $0x1a0] sm:$0xff] %v668
                  %v670 = vld [vmem:[%s562 + $0x338] sm:$0xff]
                  %671 = vst [vmem:[%s563 + $0x1a8] sm:$0xff] %v670
                  %v672 = vld [vmem:[%s562 + $0x340] sm:$0xff]
                  %673 = vst [vmem:[%s563 + $0x1b0] sm:$0xff] %v672
                  %v674 = vld [vmem:[%s562 + $0x348] sm:$0xff]
                  %675 = vst [vmem:[%s563 + $0x1b8] sm:$0xff] %v674
                  %v676 = vld [vmem:[%s562 + $0x350] sm:$0xff]
                  %677 = vst [vmem:[%s563 + $0x1c0] sm:$0xff] %v676
                  %v678 = vld [vmem:[%s562 + $0x358] sm:$0xff]
                  %679 = vst [vmem:[%s563 + $0x1c8] sm:$0xff] %v678
                  %v680 = vld [vmem:[%s562 + $0x360] sm:$0xff]
                  %681 = vst [vmem:[%s563 + $0x1d0] sm:$0xff] %v680
                  %v682 = vld [vmem:[%s562 + $0x368] sm:$0xff]
                  %683 = vst [vmem:[%s563 + $0x1d8] sm:$0xff] %v682
                  %v684 = vld [vmem:[%s562 + $0x370] sm:$0xff]
                  %685 = vst [vmem:[%s563 + $0x1e0] sm:$0xff] %v684
                  %v686 = vld [vmem:[%s562 + $0x378] sm:$0xff]
                  %687 = vst [vmem:[%s563 + $0x1e8] sm:$0xff] %v686
                  %v688 = vld [vmem:[%s562 + $0x380] sm:$0xff]
                  %689 = vst [vmem:[%s563 + $0x1f0] sm:$0xff] %v688
                  %v690 = vld [vmem:[%s562 + $0x388] sm:$0xff]
                  %691 = vst [vmem:[%s563 + $0x1f8] sm:$0xff] %v690
                  %v692 = vld [vmem:[%s562 + $0x390] sm:$0xff]
                  %693 = vst [vmem:[%s563 + $0x200] sm:$0xff] %v692
                  %v694 = vld [vmem:[%s562 + $0x398] sm:$0xff]
                  %695 = vst [vmem:[%s563 + $0x208] sm:$0xff] %v694
                  %v696 = vld [vmem:[%s562 + $0x3a0] sm:$0xff]
                  %697 = vst [vmem:[%s563 + $0x210] sm:$0xff] %v696
                  %v698 = vld [vmem:[%s562 + $0x3a8] sm:$0xff]
                  %699 = vst [vmem:[%s563 + $0x218] sm:$0xff] %v698
                  %v700 = vld [vmem:[%s562 + $0x3b0] sm:$0xff]
                  %701 = vst [vmem:[%s563 + $0x220] sm:$0xff] %v700
                  %v702 = vld [vmem:[%s562 + $0x3b8] sm:$0xff]
                  %703 = vst [vmem:[%s563 + $0x228] sm:$0xff] %v702
                  %v704 = vld [vmem:[%s562 + $0x3c0] sm:$0xff]
                  %705 = vst [vmem:[%s563 + $0x230] sm:$0xff] %v704
                  %v706 = vld [vmem:[%s562 + $0x3c8] sm:$0xff]
                  %707 = vst [vmem:[%s563 + $0x238] sm:$0xff] %v706
                  %v708 = vld [vmem:[%s562 + $0x3d0] sm:$0xff]
                  %709 = vst [vmem:[%s563 + $0x240] sm:$0xff] %v708
                  %v710 = vld [vmem:[%s562 + $0x3d8] sm:$0xff]
                  %711 = vst [vmem:[%s563 + $0x248] sm:$0xff] %v710
                  %v712 = vld [vmem:[%s562 + $0x3e0] sm:$0xff]
                  %713 = vst [vmem:[%s563 + $0x250] sm:$0xff] %v712
                  %v714 = vld [vmem:[%s562 + $0x3e8] sm:$0xff]
                  %715 = vst [vmem:[%s563 + $0x258] sm:$0xff] %v714
                  %v716 = vld [vmem:[%s562 + $0x3f0] sm:$0xff]
                  %717 = vst [vmem:[%s563 + $0x260] sm:$0xff] %v716
                  %v718 = vld [vmem:[%s562 + $0x3f8] sm:$0xff]
                  %719 = vst [vmem:[%s563 + $0x268] sm:$0xff] %v718
                  %v720 = vld [vmem:[%s562 + $0x400] sm:$0xff]
                  %721 = vst [vmem:[%s563 + $0x270] sm:$0xff] %v720
                  %v722 = vld [vmem:[%s562 + $0x408] sm:$0xff]
                  %723 = vst [vmem:[%s563 + $0x278] sm:$0xff] %v722
                  %v724 = vld [vmem:[%s562 + $0x410] sm:$0xff]
                  %725 = vst [vmem:[%s563 + $0x280] sm:$0xff] %v724
                  %v726 = vld [vmem:[%s562 + $0x418] sm:$0xff]
                  %727 = vst [vmem:[%s563 + $0x288] sm:$0xff] %v726
                  %v728 = vld [vmem:[%s562 + $0x420] sm:$0xff]
                  %729 = vst [vmem:[%s563 + $0x290] sm:$0xff] %v728
                  %v730 = vld [vmem:[%s562 + $0x428] sm:$0xff]
                  %731 = vst [vmem:[%s563 + $0x298] sm:$0xff] %v730
                  %v732 = vld [vmem:[%s562 + $0x430] sm:$0xff]
                  %733 = vst [vmem:[%s563 + $0x2a0] sm:$0xff] %v732
                  %v734 = vld [vmem:[%s562 + $0x438] sm:$0xff]
                  %735 = vst [vmem:[%s563 + $0x2a8] sm:$0xff] %v734
                  %v736 = vld [vmem:[%s562 + $0x440] sm:$0xff]
                  %737 = vst [vmem:[%s563 + $0x2b0] sm:$0xff] %v736
                  %v738 = vld [vmem:[%s562 + $0x448] sm:$0xff]
                  %739 = vst [vmem:[%s563 + $0x2b8] sm:$0xff] %v738
                  %v740 = vld [vmem:[%s562 + $0x450] sm:$0xff]
                  %741 = vst [vmem:[%s563 + $0x2c0] sm:$0xff] %v740
                  %v742 = vld [vmem:[%s562 + $0x458] sm:$0xff]
                  %743 = vst [vmem:[%s563 + $0x2c8] sm:$0xff] %v742
                  %v744 = vld [vmem:[%s562 + $0x460] sm:$0xff]
                  %745 = vst [vmem:[%s563 + $0x2d0] sm:$0xff] %v744
                  %v746 = vld [vmem:[%s562 + $0x468] sm:$0xff]
                  %747 = vst [vmem:[%s563 + $0x2d8] sm:$0xff] %v746
                  %v748 = vld [vmem:[%s562 + $0x470] sm:$0xff]
                  %749 = vst [vmem:[%s563 + $0x2e0] sm:$0xff] %v748
                  %v750 = vld [vmem:[%s562 + $0x478] sm:$0xff]
                  %751 = vst [vmem:[%s563 + $0x2e8] sm:$0xff] %v750
                  %v752 = vld [vmem:[%s562 + $0x480] sm:$0xff]
                  %753 = vst [vmem:[%s563 + $0x2f0] sm:$0xff] %v752
                  %v754 = vld [vmem:[%s562 + $0x488] sm:$0xff]
                  %755 = vst [vmem:[%s563 + $0x2f8] sm:$0xff] %v754
                  %v756 = vld [vmem:[%s562 + $0x490] sm:$0xff]
                  %757 = vst [vmem:[%s563 + $0x300] sm:$0xff] %v756
                  %v758 = vld [vmem:[%s562 + $0x498] sm:$0xff]
                  %759 = vst [vmem:[%s563 + $0x308] sm:$0xff] %v758
                  %v760 = vld [vmem:[%s562 + $0x4a0] sm:$0xff]
                  %761 = vst [vmem:[%s563 + $0x310] sm:$0xff] %v760
                  %v762 = vld [vmem:[%s562 + $0x4a8] sm:$0xff]
                  %763 = vst [vmem:[%s563 + $0x318] sm:$0xff] %v762
                  %v764 = vld [vmem:[%s562 + $0x640] sm:$0xff]
                  %765 = vst [vmem:[%s563 + $0x320] sm:$0xff] %v764
                  %v766 = vld [vmem:[%s562 + $0x648] sm:$0xff]
                  %767 = vst [vmem:[%s563 + $0x328] sm:$0xff] %v766
                  %v768 = vld [vmem:[%s562 + $0x650] sm:$0xff]
                  %769 = vst [vmem:[%s563 + $0x330] sm:$0xff] %v768
                  %v770 = vld [vmem:[%s562 + $0x658] sm:$0xff]
                  %771 = vst [vmem:[%s563 + $0x338] sm:$0xff] %v770
                  %v772 = vld [vmem:[%s562 + $0x660] sm:$0xff]
                  %773 = vst [vmem:[%s563 + $0x340] sm:$0xff] %v772
                  %v774 = vld [vmem:[%s562 + $0x668] sm:$0xff]
                  %775 = vst [vmem:[%s563 + $0x348] sm:$0xff] %v774
                  %v776 = vld [vmem:[%s562 + $0x670] sm:$0xff]
                  %777 = vst [vmem:[%s563 + $0x350] sm:$0xff] %v776
                  %v778 = vld [vmem:[%s562 + $0x678] sm:$0xff]
                  %779 = vst [vmem:[%s563 + $0x358] sm:$0xff] %v778
                  %v780 = vld [vmem:[%s562 + $0x680] sm:$0xff]
                  %781 = vst [vmem:[%s563 + $0x360] sm:$0xff] %v780
                  %v782 = vld [vmem:[%s562 + $0x688] sm:$0xff]
                  %783 = vst [vmem:[%s563 + $0x368] sm:$0xff] %v782
                  %v784 = vld [vmem:[%s562 + $0x690] sm:$0xff]
                  %785 = vst [vmem:[%s563 + $0x370] sm:$0xff] %v784
                  %v786 = vld [vmem:[%s562 + $0x698] sm:$0xff]
                  %787 = vst [vmem:[%s563 + $0x378] sm:$0xff] %v786
                  %v788 = vld [vmem:[%s562 + $0x6a0] sm:$0xff]
                  %789 = vst [vmem:[%s563 + $0x380] sm:$0xff] %v788
                  %v790 = vld [vmem:[%s562 + $0x6a8] sm:$0xff]
                  %791 = vst [vmem:[%s563 + $0x388] sm:$0xff] %v790
                  %v792 = vld [vmem:[%s562 + $0x6b0] sm:$0xff]
                  %793 = vst [vmem:[%s563 + $0x390] sm:$0xff] %v792
                  %v794 = vld [vmem:[%s562 + $0x6b8] sm:$0xff]
                  %795 = vst [vmem:[%s563 + $0x398] sm:$0xff] %v794
                  %v796 = vld [vmem:[%s562 + $0x6c0] sm:$0xff]
                  %797 = vst [vmem:[%s563 + $0x3a0] sm:$0xff] %v796
                  %v798 = vld [vmem:[%s562 + $0x6c8] sm:$0xff]
                  %799 = vst [vmem:[%s563 + $0x3a8] sm:$0xff] %v798
                  %v800 = vld [vmem:[%s562 + $0x6d0] sm:$0xff]
                  %801 = vst [vmem:[%s563 + $0x3b0] sm:$0xff] %v800
                  %v802 = vld [vmem:[%s562 + $0x6d8] sm:$0xff]
                  %803 = vst [vmem:[%s563 + $0x3b8] sm:$0xff] %v802
                  %v804 = vld [vmem:[%s562 + $0x6e0] sm:$0xff]
                  %805 = vst [vmem:[%s563 + $0x3c0] sm:$0xff] %v804
                  %v806 = vld [vmem:[%s562 + $0x6e8] sm:$0xff]
                  %807 = vst [vmem:[%s563 + $0x3c8] sm:$0xff] %v806
                  %v808 = vld [vmem:[%s562 + $0x6f0] sm:$0xff]
                  %809 = vst [vmem:[%s563 + $0x3d0] sm:$0xff] %v808
                  %v810 = vld [vmem:[%s562 + $0x6f8] sm:$0xff]
                  %811 = vst [vmem:[%s563 + $0x3d8] sm:$0xff] %v810
                  %v812 = vld [vmem:[%s562 + $0x700] sm:$0xff]
                  %813 = vst [vmem:[%s563 + $0x3e0] sm:$0xff] %v812
                  %v814 = vld [vmem:[%s562 + $0x708] sm:$0xff]
                  %815 = vst [vmem:[%s563 + $0x3e8] sm:$0xff] %v814
                  %v816 = vld [vmem:[%s562 + $0x710] sm:$0xff]
                  %817 = vst [vmem:[%s563 + $0x3f0] sm:$0xff] %v816
                  %v818 = vld [vmem:[%s562 + $0x718] sm:$0xff]
                  %819 = vst [vmem:[%s563 + $0x3f8] sm:$0xff] %v818
                  %v820 = vld [vmem:[%s562 + $0x720] sm:$0xff]
                  %821 = vst [vmem:[%s563 + $0x400] sm:$0xff] %v820
                  %v822 = vld [vmem:[%s562 + $0x728] sm:$0xff]
                  %823 = vst [vmem:[%s563 + $0x408] sm:$0xff] %v822
                  %v824 = vld [vmem:[%s562 + $0x730] sm:$0xff]
                  %825 = vst [vmem:[%s563 + $0x410] sm:$0xff] %v824
                  %v826 = vld [vmem:[%s562 + $0x738] sm:$0xff]
                  %827 = vst [vmem:[%s563 + $0x418] sm:$0xff] %v826
                  %v828 = vld [vmem:[%s562 + $0x740] sm:$0xff]
                  %829 = vst [vmem:[%s563 + $0x420] sm:$0xff] %v828
                  %v830 = vld [vmem:[%s562 + $0x748] sm:$0xff]
                  %831 = vst [vmem:[%s563 + $0x428] sm:$0xff] %v830
                  %v832 = vld [vmem:[%s562 + $0x750] sm:$0xff]
                  %833 = vst [vmem:[%s563 + $0x430] sm:$0xff] %v832
                  %v834 = vld [vmem:[%s562 + $0x758] sm:$0xff]
                  %835 = vst [vmem:[%s563 + $0x438] sm:$0xff] %v834
                  %v836 = vld [vmem:[%s562 + $0x760] sm:$0xff]
                  %837 = vst [vmem:[%s563 + $0x440] sm:$0xff] %v836
                  %v838 = vld [vmem:[%s562 + $0x768] sm:$0xff]
                  %839 = vst [vmem:[%s563 + $0x448] sm:$0xff] %v838
                  %v840 = vld [vmem:[%s562 + $0x770] sm:$0xff]
                  %841 = vst [vmem:[%s563 + $0x450] sm:$0xff] %v840
                  %v842 = vld [vmem:[%s562 + $0x778] sm:$0xff]
                  %843 = vst [vmem:[%s563 + $0x458] sm:$0xff] %v842
                  %v844 = vld [vmem:[%s562 + $0x780] sm:$0xff]
                  %845 = vst [vmem:[%s563 + $0x460] sm:$0xff] %v844
                  %v846 = vld [vmem:[%s562 + $0x788] sm:$0xff]
                  %847 = vst [vmem:[%s563 + $0x468] sm:$0xff] %v846
                  %v848 = vld [vmem:[%s562 + $0x790] sm:$0xff]
                  %849 = vst [vmem:[%s563 + $0x470] sm:$0xff] %v848
                  %v850 = vld [vmem:[%s562 + $0x798] sm:$0xff]
                  %851 = vst [vmem:[%s563 + $0x478] sm:$0xff] %v850
                  %v852 = vld [vmem:[%s562 + $0x7a0] sm:$0xff]
                  %853 = vst [vmem:[%s563 + $0x480] sm:$0xff] %v852
                  %v854 = vld [vmem:[%s562 + $0x7a8] sm:$0xff]
                  %855 = vst [vmem:[%s563 + $0x488] sm:$0xff] %v854
                  %v856 = vld [vmem:[%s562 + $0x7b0] sm:$0xff]
                  %857 = vst [vmem:[%s563 + $0x490] sm:$0xff] %v856
                  %v858 = vld [vmem:[%s562 + $0x7b8] sm:$0xff]
                  %859 = vst [vmem:[%s563 + $0x498] sm:$0xff] %v858
                  %v860 = vld [vmem:[%s562 + $0x7c0] sm:$0xff]
                  %861 = vst [vmem:[%s563 + $0x4a0] sm:$0xff] %v860
                  %v862 = vld [vmem:[%s562 + $0x7c8] sm:$0xff]
                  %863 = vst [vmem:[%s563 + $0x4a8] sm:$0xff] %v862
                  %v864 = vld [vmem:[%s562 + $0x960] sm:$0xff]
                  %865 = vst [vmem:[%s563 + $0x4b0] sm:$0xff] %v864
                  %v866 = vld [vmem:[%s562 + $0x968] sm:$0xff]
                  %867 = vst [vmem:[%s563 + $0x4b8] sm:$0xff] %v866
                  %v868 = vld [vmem:[%s562 + $0x970] sm:$0xff]
                  %869 = vst [vmem:[%s563 + $0x4c0] sm:$0xff] %v868
                  %v870 = vld [vmem:[%s562 + $0x978] sm:$0xff]
                  %871 = vst [vmem:[%s563 + $0x4c8] sm:$0xff] %v870
                  %v872 = vld [vmem:[%s562 + $0x980] sm:$0xff]
                  %873 = vst [vmem:[%s563 + $0x4d0] sm:$0xff] %v872
                  %v874 = vld [vmem:[%s562 + $0x988] sm:$0xff]
                  %875 = vst [vmem:[%s563 + $0x4d8] sm:$0xff] %v874
                  %v876 = vld [vmem:[%s562 + $0x990] sm:$0xff]
                  %877 = vst [vmem:[%s563 + $0x4e0] sm:$0xff] %v876
                  %v878 = vld [vmem:[%s562 + $0x998] sm:$0xff]
                  %879 = vst [vmem:[%s563 + $0x4e8] sm:$0xff] %v878
                  %v880 = vld [vmem:[%s562 + $0x9a0] sm:$0xff]
                  %881 = vst [vmem:[%s563 + $0x4f0] sm:$0xff] %v880
                  %v882 = vld [vmem:[%s562 + $0x9a8] sm:$0xff]
                  %883 = vst [vmem:[%s563 + $0x4f8] sm:$0xff] %v882
                  %v884 = vld [vmem:[%s562 + $0x9b0] sm:$0xff]
                  %885 = vst [vmem:[%s563 + $0x500] sm:$0xff] %v884
                  %v886 = vld [vmem:[%s562 + $0x9b8] sm:$0xff]
                  %887 = vst [vmem:[%s563 + $0x508] sm:$0xff] %v886
                  %v888 = vld [vmem:[%s562 + $0x9c0] sm:$0xff]
                  %889 = vst [vmem:[%s563 + $0x510] sm:$0xff] %v888
                  %v890 = vld [vmem:[%s562 + $0x9c8] sm:$0xff]
                  %891 = vst [vmem:[%s563 + $0x518] sm:$0xff] %v890
                  %v892 = vld [vmem:[%s562 + $0x9d0] sm:$0xff]
                  %893 = vst [vmem:[%s563 + $0x520] sm:$0xff] %v892
                  %v894 = vld [vmem:[%s562 + $0x9d8] sm:$0xff]
                  %895 = vst [vmem:[%s563 + $0x528] sm:$0xff] %v894
                  %v896 = vld [vmem:[%s562 + $0x9e0] sm:$0xff]
                  %897 = vst [vmem:[%s563 + $0x530] sm:$0xff] %v896
                  %v898 = vld [vmem:[%s562 + $0x9e8] sm:$0xff]
                  %899 = vst [vmem:[%s563 + $0x538] sm:$0xff] %v898
                  %v900 = vld [vmem:[%s562 + $0x9f0] sm:$0xff]
                  %901 = vst [vmem:[%s563 + $0x540] sm:$0xff] %v900
                  %v902 = vld [vmem:[%s562 + $0x9f8] sm:$0xff]
                  %903 = vst [vmem:[%s563 + $0x548] sm:$0xff] %v902
                  %v904 = vld [vmem:[%s562 + $0xa00] sm:$0xff]
                  %905 = vst [vmem:[%s563 + $0x550] sm:$0xff] %v904
                  %v906 = vld [vmem:[%s562 + $0xa08] sm:$0xff]
                  %907 = vst [vmem:[%s563 + $0x558] sm:$0xff] %v906
                  %v908 = vld [vmem:[%s562 + $0xa10] sm:$0xff]
                  %909 = vst [vmem:[%s563 + $0x560] sm:$0xff] %v908
                  %v910 = vld [vmem:[%s562 + $0xa18] sm:$0xff]
                  %911 = vst [vmem:[%s563 + $0x568] sm:$0xff] %v910
                  %v912 = vld [vmem:[%s562 + $0xa20] sm:$0xff]
                  %913 = vst [vmem:[%s563 + $0x570] sm:$0xff] %v912
                  %v914 = vld [vmem:[%s562 + $0xa28] sm:$0xff]
                  %915 = vst [vmem:[%s563 + $0x578] sm:$0xff] %v914
                  %v916 = vld [vmem:[%s562 + $0xa30] sm:$0xff]
                  %917 = vst [vmem:[%s563 + $0x580] sm:$0xff] %v916
                  %v918 = vld [vmem:[%s562 + $0xa38] sm:$0xff]
                  %919 = vst [vmem:[%s563 + $0x588] sm:$0xff] %v918
                  %v920 = vld [vmem:[%s562 + $0xa40] sm:$0xff]
                  %921 = vst [vmem:[%s563 + $0x590] sm:$0xff] %v920
                  %v922 = vld [vmem:[%s562 + $0xa48] sm:$0xff]
                  %923 = vst [vmem:[%s563 + $0x598] sm:$0xff] %v922
                  %v924 = vld [vmem:[%s562 + $0xa50] sm:$0xff]
                  %925 = vst [vmem:[%s563 + $0x5a0] sm:$0xff] %v924
                  %v926 = vld [vmem:[%s562 + $0xa58] sm:$0xff]
                  %927 = vst [vmem:[%s563 + $0x5a8] sm:$0xff] %v926
                  %v928 = vld [vmem:[%s562 + $0xa60] sm:$0xff]
                  %929 = vst [vmem:[%s563 + $0x5b0] sm:$0xff] %v928
                  %v930 = vld [vmem:[%s562 + $0xa68] sm:$0xff]
                  %931 = vst [vmem:[%s563 + $0x5b8] sm:$0xff] %v930
                  %v932 = vld [vmem:[%s562 + $0xa70] sm:$0xff]
                  %933 = vst [vmem:[%s563 + $0x5c0] sm:$0xff] %v932
                  %v934 = vld [vmem:[%s562 + $0xa78] sm:$0xff]
                  %935 = vst [vmem:[%s563 + $0x5c8] sm:$0xff] %v934
                  %v936 = vld [vmem:[%s562 + $0xa80] sm:$0xff]
                  %937 = vst [vmem:[%s563 + $0x5d0] sm:$0xff] %v936
                  %v938 = vld [vmem:[%s562 + $0xa88] sm:$0xff]
                  %939 = vst [vmem:[%s563 + $0x5d8] sm:$0xff] %v938
                  %v940 = vld [vmem:[%s562 + $0xa90] sm:$0xff]
                  %941 = vst [vmem:[%s563 + $0x5e0] sm:$0xff] %v940
                  %v942 = vld [vmem:[%s562 + $0xa98] sm:$0xff]
                  %943 = vst [vmem:[%s563 + $0x5e8] sm:$0xff] %v942
                  %v944 = vld [vmem:[%s562 + $0xaa0] sm:$0xff]
                  %945 = vst [vmem:[%s563 + $0x5f0] sm:$0xff] %v944
                  %v946 = vld [vmem:[%s562 + $0xaa8] sm:$0xff]
                  %947 = vst [vmem:[%s563 + $0x5f8] sm:$0xff] %v946
                  %v948 = vld [vmem:[%s562 + $0xab0] sm:$0xff]
                  %949 = vst [vmem:[%s563 + $0x600] sm:$0xff] %v948
                  %v950 = vld [vmem:[%s562 + $0xab8] sm:$0xff]
                  %951 = vst [vmem:[%s563 + $0x608] sm:$0xff] %v950
                  %v952 = vld [vmem:[%s562 + $0xac0] sm:$0xff]
                  %953 = vst [vmem:[%s563 + $0x610] sm:$0xff] %v952
                  %v954 = vld [vmem:[%s562 + $0xac8] sm:$0xff]
                  %955 = vst [vmem:[%s563 + $0x618] sm:$0xff] %v954
                  %v956 = vld [vmem:[%s562 + $0xad0] sm:$0xff]
                  %957 = vst [vmem:[%s563 + $0x620] sm:$0xff] %v956
                  %v958 = vld [vmem:[%s562 + $0xad8] sm:$0xff]
                  %959 = vst [vmem:[%s563 + $0x628] sm:$0xff] %v958
                  %v960 = vld [vmem:[%s562 + $0xae0] sm:$0xff]
                  %961 = vst [vmem:[%s563 + $0x630] sm:$0xff] %v960
                  %v962 = vld [vmem:[%s562 + $0xae8] sm:$0xff]
                  %963 = vst [vmem:[%s563 + $0x638] sm:$0xff] %v962
                $region56: #{tpu_custom_call.1} parent=50 // loop_footer
                  %s561 = sadd.s32 1, %s557
                $region57: #{tpu_custom_call.1} parent=50 // loop_footer_branch
                  %556 = sbr.rel target = $region53
                $region58: #{tpu_custom_call.1} parent=50 // loop_exit
                  _
              $region51: #{tpu_custom_call.1} parent=35 // pred_fallthru
                _
              // Predicated region
              $region59: #{tpu_custom_call.1} parent=35 // pred_check
                _
              $region60: #{tpu_custom_call.1} parent=35 // pred_check_branch
                %965 = sbr.rel target = $region62
              $region61: #{tpu_custom_call.1} parent=35 // pred_region
                _
              $region62: #{tpu_custom_call.1} parent=35 // pred_fallthru
                _
            $region36: #{tpu_custom_call.1} parent=31 // pred_fallthru
              _
            // Predicated region
            $region37: #{tpu_custom_call.1} parent=31 // pred_check
              _
            $region38: #{tpu_custom_call.1} parent=31 // pred_check_branch
              %143 = sbr.rel target = $region40
            $region39: #{tpu_custom_call.1} parent=31 // pred_region
              %s145 = ssub.s32 256, 1
              loop: start=0, step=1, limit=1
              $region41: #{tpu_custom_call.1} parent=39 // loop_pre_header
                _
              $region42: #{tpu_custom_call.1} parent=39 // loop_header
                %s147 = sphi 0, %s151
                %p148 = scmp.ge.s32.totalorder %s147, 1
                %s152 = sphi %s137, %s137
                %s153 = sphi %s134, %s134
              $region43: #{tpu_custom_call.1} parent=39 // loop_header_branch
                %150 = sbr.rel (%p148) target = $region47
              $region44: #{tpu_custom_call.1} parent=39 // loop_body
                %v154 = vld [vmem:[%s152] sm:%s145]
                %155 = vst [vmem:[%s153] sm:%s145] %v154
                %v156 = vld [vmem:[%s152 + $0x8] sm:%s145]
                %157 = vst [vmem:[%s153 + $0x8] sm:%s145] %v156
                %v158 = vld [vmem:[%s152 + $0x10] sm:%s145]
                %159 = vst [vmem:[%s153 + $0x10] sm:%s145] %v158
                %v160 = vld [vmem:[%s152 + $0x18] sm:%s145]
                %161 = vst [vmem:[%s153 + $0x18] sm:%s145] %v160
                %v162 = vld [vmem:[%s152 + $0x20] sm:%s145]
                %163 = vst [vmem:[%s153 + $0x20] sm:%s145] %v162
                %v164 = vld [vmem:[%s152 + $0x28] sm:%s145]
                %165 = vst [vmem:[%s153 + $0x28] sm:%s145] %v164
                %v166 = vld [vmem:[%s152 + $0x30] sm:%s145]
                %167 = vst [vmem:[%s153 + $0x30] sm:%s145] %v166
                %v168 = vld [vmem:[%s152 + $0x38] sm:%s145]
                %169 = vst [vmem:[%s153 + $0x38] sm:%s145] %v168
                %v170 = vld [vmem:[%s152 + $0x40] sm:%s145]
                %171 = vst [vmem:[%s153 + $0x40] sm:%s145] %v170
                %v172 = vld [vmem:[%s152 + $0x48] sm:%s145]
                %173 = vst [vmem:[%s153 + $0x48] sm:%s145] %v172
                %v174 = vld [vmem:[%s152 + $0x50] sm:%s145]
                %175 = vst [vmem:[%s153 + $0x50] sm:%s145] %v174
                %v176 = vld [vmem:[%s152 + $0x58] sm:%s145]
                %177 = vst [vmem:[%s153 + $0x58] sm:%s145] %v176
                %v178 = vld [vmem:[%s152 + $0x60] sm:%s145]
                %179 = vst [vmem:[%s153 + $0x60] sm:%s145] %v178
                %v180 = vld [vmem:[%s152 + $0x68] sm:%s145]
                %181 = vst [vmem:[%s153 + $0x68] sm:%s145] %v180
                %v182 = vld [vmem:[%s152 + $0x70] sm:%s145]
                %183 = vst [vmem:[%s153 + $0x70] sm:%s145] %v182
                %v184 = vld [vmem:[%s152 + $0x78] sm:%s145]
                %185 = vst [vmem:[%s153 + $0x78] sm:%s145] %v184
                %v186 = vld [vmem:[%s152 + $0x80] sm:%s145]
                %187 = vst [vmem:[%s153 + $0x80] sm:%s145] %v186
                %v188 = vld [vmem:[%s152 + $0x88] sm:%s145]
                %189 = vst [vmem:[%s153 + $0x88] sm:%s145] %v188
                %v190 = vld [vmem:[%s152 + $0x90] sm:%s145]
                %191 = vst [vmem:[%s153 + $0x90] sm:%s145] %v190
                %v192 = vld [vmem:[%s152 + $0x98] sm:%s145]
                %193 = vst [vmem:[%s153 + $0x98] sm:%s145] %v192
                %v194 = vld [vmem:[%s152 + $0xa0] sm:%s145]
                %195 = vst [vmem:[%s153 + $0xa0] sm:%s145] %v194
                %v196 = vld [vmem:[%s152 + $0xa8] sm:%s145]
                %197 = vst [vmem:[%s153 + $0xa8] sm:%s145] %v196
                %v198 = vld [vmem:[%s152 + $0xb0] sm:%s145]
                %199 = vst [vmem:[%s153 + $0xb0] sm:%s145] %v198
                %v200 = vld [vmem:[%s152 + $0xb8] sm:%s145]
                %201 = vst [vmem:[%s153 + $0xb8] sm:%s145] %v200
                %v202 = vld [vmem:[%s152 + $0xc0] sm:%s145]
                %203 = vst [vmem:[%s153 + $0xc0] sm:%s145] %v202
                %v204 = vld [vmem:[%s152 + $0xc8] sm:%s145]
                %205 = vst [vmem:[%s153 + $0xc8] sm:%s145] %v204
                %v206 = vld [vmem:[%s152 + $0xd0] sm:%s145]
                %207 = vst [vmem:[%s153 + $0xd0] sm:%s145] %v206
                %v208 = vld [vmem:[%s152 + $0xd8] sm:%s145]
                %209 = vst [vmem:[%s153 + $0xd8] sm:%s145] %v208
                %v210 = vld [vmem:[%s152 + $0xe0] sm:%s145]
                %211 = vst [vmem:[%s153 + $0xe0] sm:%s145] %v210
                %v212 = vld [vmem:[%s152 + $0xe8] sm:%s145]
                %213 = vst [vmem:[%s153 + $0xe8] sm:%s145] %v212
                %v214 = vld [vmem:[%s152 + $0xf0] sm:%s145]
                %215 = vst [vmem:[%s153 + $0xf0] sm:%s145] %v214
                %v216 = vld [vmem:[%s152 + $0xf8] sm:%s145]
                %217 = vst [vmem:[%s153 + $0xf8] sm:%s145] %v216
                %v218 = vld [vmem:[%s152 + $0x100] sm:%s145]
                %219 = vst [vmem:[%s153 + $0x100] sm:%s145] %v218
                %v220 = vld [vmem:[%s152 + $0x108] sm:%s145]
                %221 = vst [vmem:[%s153 + $0x108] sm:%s145] %v220
                %v222 = vld [vmem:[%s152 + $0x110] sm:%s145]
                %223 = vst [vmem:[%s153 + $0x110] sm:%s145] %v222
                %v224 = vld [vmem:[%s152 + $0x118] sm:%s145]
                %225 = vst [vmem:[%s153 + $0x118] sm:%s145] %v224
                %v226 = vld [vmem:[%s152 + $0x120] sm:%s145]
                %227 = vst [vmem:[%s153 + $0x120] sm:%s145] %v226
                %v228 = vld [vmem:[%s152 + $0x128] sm:%s145]
                %229 = vst [vmem:[%s153 + $0x128] sm:%s145] %v228
                %v230 = vld [vmem:[%s152 + $0x130] sm:%s145]
                %231 = vst [vmem:[%s153 + $0x130] sm:%s145] %v230
                %v232 = vld [vmem:[%s152 + $0x138] sm:%s145]
                %233 = vst [vmem:[%s153 + $0x138] sm:%s145] %v232
                %v234 = vld [vmem:[%s152 + $0x140] sm:%s145]
                %235 = vst [vmem:[%s153 + $0x140] sm:%s145] %v234
                %v236 = vld [vmem:[%s152 + $0x148] sm:%s145]
                %237 = vst [vmem:[%s153 + $0x148] sm:%s145] %v236
                %v238 = vld [vmem:[%s152 + $0x150] sm:%s145]
                %239 = vst [vmem:[%s153 + $0x150] sm:%s145] %v238
                %v240 = vld [vmem:[%s152 + $0x158] sm:%s145]
                %241 = vst [vmem:[%s153 + $0x158] sm:%s145] %v240
                %v242 = vld [vmem:[%s152 + $0x160] sm:%s145]
                %243 = vst [vmem:[%s153 + $0x160] sm:%s145] %v242
                %v244 = vld [vmem:[%s152 + $0x168] sm:%s145]
                %245 = vst [vmem:[%s153 + $0x168] sm:%s145] %v244
                %v246 = vld [vmem:[%s152 + $0x170] sm:%s145]
                %247 = vst [vmem:[%s153 + $0x170] sm:%s145] %v246
                %v248 = vld [vmem:[%s152 + $0x178] sm:%s145]
                %249 = vst [vmem:[%s153 + $0x178] sm:%s145] %v248
                %v250 = vld [vmem:[%s152 + $0x180] sm:%s145]
                %251 = vst [vmem:[%s153 + $0x180] sm:%s145] %v250
                %v252 = vld [vmem:[%s152 + $0x188] sm:%s145]
                %253 = vst [vmem:[%s153 + $0x188] sm:%s145] %v252
                %v254 = vld [vmem:[%s152 + $0x320] sm:%s145]
                %255 = vst [vmem:[%s153 + $0x190] sm:%s145] %v254
                %v256 = vld [vmem:[%s152 + $0x328] sm:%s145]
                %257 = vst [vmem:[%s153 + $0x198] sm:%s145] %v256
                %v258 = vld [vmem:[%s152 + $0x330] sm:%s145]
                %259 = vst [vmem:[%s153 + $0x1a0] sm:%s145] %v258
                %v260 = vld [vmem:[%s152 + $0x338] sm:%s145]
                %261 = vst [vmem:[%s153 + $0x1a8] sm:%s145] %v260
                %v262 = vld [vmem:[%s152 + $0x340] sm:%s145]
                %263 = vst [vmem:[%s153 + $0x1b0] sm:%s145] %v262
                %v264 = vld [vmem:[%s152 + $0x348] sm:%s145]
                %265 = vst [vmem:[%s153 + $0x1b8] sm:%s145] %v264
                %v266 = vld [vmem:[%s152 + $0x350] sm:%s145]
                %267 = vst [vmem:[%s153 + $0x1c0] sm:%s145] %v266
                %v268 = vld [vmem:[%s152 + $0x358] sm:%s145]
                %269 = vst [vmem:[%s153 + $0x1c8] sm:%s145] %v268
                %v270 = vld [vmem:[%s152 + $0x360] sm:%s145]
                %271 = vst [vmem:[%s153 + $0x1d0] sm:%s145] %v270
                %v272 = vld [vmem:[%s152 + $0x368] sm:%s145]
                %273 = vst [vmem:[%s153 + $0x1d8] sm:%s145] %v272
                %v274 = vld [vmem:[%s152 + $0x370] sm:%s145]
                %275 = vst [vmem:[%s153 + $0x1e0] sm:%s145] %v274
                %v276 = vld [vmem:[%s152 + $0x378] sm:%s145]
                %277 = vst [vmem:[%s153 + $0x1e8] sm:%s145] %v276
                %v278 = vld [vmem:[%s152 + $0x380] sm:%s145]
                %279 = vst [vmem:[%s153 + $0x1f0] sm:%s145] %v278
                %v280 = vld [vmem:[%s152 + $0x388] sm:%s145]
                %281 = vst [vmem:[%s153 + $0x1f8] sm:%s145] %v280
                %v282 = vld [vmem:[%s152 + $0x390] sm:%s145]
                %283 = vst [vmem:[%s153 + $0x200] sm:%s145] %v282
                %v284 = vld [vmem:[%s152 + $0x398] sm:%s145]
                %285 = vst [vmem:[%s153 + $0x208] sm:%s145] %v284
                %v286 = vld [vmem:[%s152 + $0x3a0] sm:%s145]
                %287 = vst [vmem:[%s153 + $0x210] sm:%s145] %v286
                %v288 = vld [vmem:[%s152 + $0x3a8] sm:%s145]
                %289 = vst [vmem:[%s153 + $0x218] sm:%s145] %v288
                %v290 = vld [vmem:[%s152 + $0x3b0] sm:%s145]
                %291 = vst [vmem:[%s153 + $0x220] sm:%s145] %v290
                %v292 = vld [vmem:[%s152 + $0x3b8] sm:%s145]
                %293 = vst [vmem:[%s153 + $0x228] sm:%s145] %v292
                %v294 = vld [vmem:[%s152 + $0x3c0] sm:%s145]
                %295 = vst [vmem:[%s153 + $0x230] sm:%s145] %v294
                %v296 = vld [vmem:[%s152 + $0x3c8] sm:%s145]
                %297 = vst [vmem:[%s153 + $0x238] sm:%s145] %v296
                %v298 = vld [vmem:[%s152 + $0x3d0] sm:%s145]
                %299 = vst [vmem:[%s153 + $0x240] sm:%s145] %v298
                %v300 = vld [vmem:[%s152 + $0x3d8] sm:%s145]
                %301 = vst [vmem:[%s153 + $0x248] sm:%s145] %v300
                %v302 = vld [vmem:[%s152 + $0x3e0] sm:%s145]
                %303 = vst [vmem:[%s153 + $0x250] sm:%s145] %v302
                %v304 = vld [vmem:[%s152 + $0x3e8] sm:%s145]
                %305 = vst [vmem:[%s153 + $0x258] sm:%s145] %v304
                %v306 = vld [vmem:[%s152 + $0x3f0] sm:%s145]
                %307 = vst [vmem:[%s153 + $0x260] sm:%s145] %v306
                %v308 = vld [vmem:[%s152 + $0x3f8] sm:%s145]
                %309 = vst [vmem:[%s153 + $0x268] sm:%s145] %v308
                %v310 = vld [vmem:[%s152 + $0x400] sm:%s145]
                %311 = vst [vmem:[%s153 + $0x270] sm:%s145] %v310
                %v312 = vld [vmem:[%s152 + $0x408] sm:%s145]
                %313 = vst [vmem:[%s153 + $0x278] sm:%s145] %v312
                %v314 = vld [vmem:[%s152 + $0x410] sm:%s145]
                %315 = vst [vmem:[%s153 + $0x280] sm:%s145] %v314
                %v316 = vld [vmem:[%s152 + $0x418] sm:%s145]
                %317 = vst [vmem:[%s153 + $0x288] sm:%s145] %v316
                %v318 = vld [vmem:[%s152 + $0x420] sm:%s145]
                %319 = vst [vmem:[%s153 + $0x290] sm:%s145] %v318
                %v320 = vld [vmem:[%s152 + $0x428] sm:%s145]
                %321 = vst [vmem:[%s153 + $0x298] sm:%s145] %v320
                %v322 = vld [vmem:[%s152 + $0x430] sm:%s145]
                %323 = vst [vmem:[%s153 + $0x2a0] sm:%s145] %v322
                %v324 = vld [vmem:[%s152 + $0x438] sm:%s145]
                %325 = vst [vmem:[%s153 + $0x2a8] sm:%s145] %v324
                %v326 = vld [vmem:[%s152 + $0x440] sm:%s145]
                %327 = vst [vmem:[%s153 + $0x2b0] sm:%s145] %v326
                %v328 = vld [vmem:[%s152 + $0x448] sm:%s145]
                %329 = vst [vmem:[%s153 + $0x2b8] sm:%s145] %v328
                %v330 = vld [vmem:[%s152 + $0x450] sm:%s145]
                %331 = vst [vmem:[%s153 + $0x2c0] sm:%s145] %v330
                %v332 = vld [vmem:[%s152 + $0x458] sm:%s145]
                %333 = vst [vmem:[%s153 + $0x2c8] sm:%s145] %v332
                %v334 = vld [vmem:[%s152 + $0x460] sm:%s145]
                %335 = vst [vmem:[%s153 + $0x2d0] sm:%s145] %v334
                %v336 = vld [vmem:[%s152 + $0x468] sm:%s145]
                %337 = vst [vmem:[%s153 + $0x2d8] sm:%s145] %v336
                %v338 = vld [vmem:[%s152 + $0x470] sm:%s145]
                %339 = vst [vmem:[%s153 + $0x2e0] sm:%s145] %v338
                %v340 = vld [vmem:[%s152 + $0x478] sm:%s145]
                %341 = vst [vmem:[%s153 + $0x2e8] sm:%s145] %v340
                %v342 = vld [vmem:[%s152 + $0x480] sm:%s145]
                %343 = vst [vmem:[%s153 + $0x2f0] sm:%s145] %v342
                %v344 = vld [vmem:[%s152 + $0x488] sm:%s145]
                %345 = vst [vmem:[%s153 + $0x2f8] sm:%s145] %v344
                %v346 = vld [vmem:[%s152 + $0x490] sm:%s145]
                %347 = vst [vmem:[%s153 + $0x300] sm:%s145] %v346
                %v348 = vld [vmem:[%s152 + $0x498] sm:%s145]
                %349 = vst [vmem:[%s153 + $0x308] sm:%s145] %v348
                %v350 = vld [vmem:[%s152 + $0x4a0] sm:%s145]
                %351 = vst [vmem:[%s153 + $0x310] sm:%s145] %v350
                %v352 = vld [vmem:[%s152 + $0x4a8] sm:%s145]
                %353 = vst [vmem:[%s153 + $0x318] sm:%s145] %v352
                %v354 = vld [vmem:[%s152 + $0x640] sm:%s145]
                %355 = vst [vmem:[%s153 + $0x320] sm:%s145] %v354
                %v356 = vld [vmem:[%s152 + $0x648] sm:%s145]
                %357 = vst [vmem:[%s153 + $0x328] sm:%s145] %v356
                %v358 = vld [vmem:[%s152 + $0x650] sm:%s145]
                %359 = vst [vmem:[%s153 + $0x330] sm:%s145] %v358
                %v360 = vld [vmem:[%s152 + $0x658] sm:%s145]
                %361 = vst [vmem:[%s153 + $0x338] sm:%s145] %v360
                %v362 = vld [vmem:[%s152 + $0x660] sm:%s145]
                %363 = vst [vmem:[%s153 + $0x340] sm:%s145] %v362
                %v364 = vld [vmem:[%s152 + $0x668] sm:%s145]
                %365 = vst [vmem:[%s153 + $0x348] sm:%s145] %v364
                %v366 = vld [vmem:[%s152 + $0x670] sm:%s145]
                %367 = vst [vmem:[%s153 + $0x350] sm:%s145] %v366
                %v368 = vld [vmem:[%s152 + $0x678] sm:%s145]
                %369 = vst [vmem:[%s153 + $0x358] sm:%s145] %v368
                %v370 = vld [vmem:[%s152 + $0x680] sm:%s145]
                %371 = vst [vmem:[%s153 + $0x360] sm:%s145] %v370
                %v372 = vld [vmem:[%s152 + $0x688] sm:%s145]
                %373 = vst [vmem:[%s153 + $0x368] sm:%s145] %v372
                %v374 = vld [vmem:[%s152 + $0x690] sm:%s145]
                %375 = vst [vmem:[%s153 + $0x370] sm:%s145] %v374
                %v376 = vld [vmem:[%s152 + $0x698] sm:%s145]
                %377 = vst [vmem:[%s153 + $0x378] sm:%s145] %v376
                %v378 = vld [vmem:[%s152 + $0x6a0] sm:%s145]
                %379 = vst [vmem:[%s153 + $0x380] sm:%s145] %v378
                %v380 = vld [vmem:[%s152 + $0x6a8] sm:%s145]
                %381 = vst [vmem:[%s153 + $0x388] sm:%s145] %v380
                %v382 = vld [vmem:[%s152 + $0x6b0] sm:%s145]
                %383 = vst [vmem:[%s153 + $0x390] sm:%s145] %v382
                %v384 = vld [vmem:[%s152 + $0x6b8] sm:%s145]
                %385 = vst [vmem:[%s153 + $0x398] sm:%s145] %v384
                %v386 = vld [vmem:[%s152 + $0x6c0] sm:%s145]
                %387 = vst [vmem:[%s153 + $0x3a0] sm:%s145] %v386
                %v388 = vld [vmem:[%s152 + $0x6c8] sm:%s145]
                %389 = vst [vmem:[%s153 + $0x3a8] sm:%s145] %v388
                %v390 = vld [vmem:[%s152 + $0x6d0] sm:%s145]
                %391 = vst [vmem:[%s153 + $0x3b0] sm:%s145] %v390
                %v392 = vld [vmem:[%s152 + $0x6d8] sm:%s145]
                %393 = vst [vmem:[%s153 + $0x3b8] sm:%s145] %v392
                %v394 = vld [vmem:[%s152 + $0x6e0] sm:%s145]
                %395 = vst [vmem:[%s153 + $0x3c0] sm:%s145] %v394
                %v396 = vld [vmem:[%s152 + $0x6e8] sm:%s145]
                %397 = vst [vmem:[%s153 + $0x3c8] sm:%s145] %v396
                %v398 = vld [vmem:[%s152 + $0x6f0] sm:%s145]
                %399 = vst [vmem:[%s153 + $0x3d0] sm:%s145] %v398
                %v400 = vld [vmem:[%s152 + $0x6f8] sm:%s145]
                %401 = vst [vmem:[%s153 + $0x3d8] sm:%s145] %v400
                %v402 = vld [vmem:[%s152 + $0x700] sm:%s145]
                %403 = vst [vmem:[%s153 + $0x3e0] sm:%s145] %v402
                %v404 = vld [vmem:[%s152 + $0x708] sm:%s145]
                %405 = vst [vmem:[%s153 + $0x3e8] sm:%s145] %v404
                %v406 = vld [vmem:[%s152 + $0x710] sm:%s145]
                %407 = vst [vmem:[%s153 + $0x3f0] sm:%s145] %v406
                %v408 = vld [vmem:[%s152 + $0x718] sm:%s145]
                %409 = vst [vmem:[%s153 + $0x3f8] sm:%s145] %v408
                %v410 = vld [vmem:[%s152 + $0x720] sm:%s145]
                %411 = vst [vmem:[%s153 + $0x400] sm:%s145] %v410
                %v412 = vld [vmem:[%s152 + $0x728] sm:%s145]
                %413 = vst [vmem:[%s153 + $0x408] sm:%s145] %v412
                %v414 = vld [vmem:[%s152 + $0x730] sm:%s145]
                %415 = vst [vmem:[%s153 + $0x410] sm:%s145] %v414
                %v416 = vld [vmem:[%s152 + $0x738] sm:%s145]
                %417 = vst [vmem:[%s153 + $0x418] sm:%s145] %v416
                %v418 = vld [vmem:[%s152 + $0x740] sm:%s145]
                %419 = vst [vmem:[%s153 + $0x420] sm:%s145] %v418
                %v420 = vld [vmem:[%s152 + $0x748] sm:%s145]
                %421 = vst [vmem:[%s153 + $0x428] sm:%s145] %v420
                %v422 = vld [vmem:[%s152 + $0x750] sm:%s145]
                %423 = vst [vmem:[%s153 + $0x430] sm:%s145] %v422
                %v424 = vld [vmem:[%s152 + $0x758] sm:%s145]
                %425 = vst [vmem:[%s153 + $0x438] sm:%s145] %v424
                %v426 = vld [vmem:[%s152 + $0x760] sm:%s145]
                %427 = vst [vmem:[%s153 + $0x440] sm:%s145] %v426
                %v428 = vld [vmem:[%s152 + $0x768] sm:%s145]
                %429 = vst [vmem:[%s153 + $0x448] sm:%s145] %v428
                %v430 = vld [vmem:[%s152 + $0x770] sm:%s145]
                %431 = vst [vmem:[%s153 + $0x450] sm:%s145] %v430
                %v432 = vld [vmem:[%s152 + $0x778] sm:%s145]
                %433 = vst [vmem:[%s153 + $0x458] sm:%s145] %v432
                %v434 = vld [vmem:[%s152 + $0x780] sm:%s145]
                %435 = vst [vmem:[%s153 + $0x460] sm:%s145] %v434
                %v436 = vld [vmem:[%s152 + $0x788] sm:%s145]
                %437 = vst [vmem:[%s153 + $0x468] sm:%s145] %v436
                %v438 = vld [vmem:[%s152 + $0x790] sm:%s145]
                %439 = vst [vmem:[%s153 + $0x470] sm:%s145] %v438
                %v440 = vld [vmem:[%s152 + $0x798] sm:%s145]
                %441 = vst [vmem:[%s153 + $0x478] sm:%s145] %v440
                %v442 = vld [vmem:[%s152 + $0x7a0] sm:%s145]
                %443 = vst [vmem:[%s153 + $0x480] sm:%s145] %v442
                %v444 = vld [vmem:[%s152 + $0x7a8] sm:%s145]
                %445 = vst [vmem:[%s153 + $0x488] sm:%s145] %v444
                %v446 = vld [vmem:[%s152 + $0x7b0] sm:%s145]
                %447 = vst [vmem:[%s153 + $0x490] sm:%s145] %v446
                %v448 = vld [vmem:[%s152 + $0x7b8] sm:%s145]
                %449 = vst [vmem:[%s153 + $0x498] sm:%s145] %v448
                %v450 = vld [vmem:[%s152 + $0x7c0] sm:%s145]
                %451 = vst [vmem:[%s153 + $0x4a0] sm:%s145] %v450
                %v452 = vld [vmem:[%s152 + $0x7c8] sm:%s145]
                %453 = vst [vmem:[%s153 + $0x4a8] sm:%s145] %v452
                %v454 = vld [vmem:[%s152 + $0x960] sm:%s145]
                %455 = vst [vmem:[%s153 + $0x4b0] sm:%s145] %v454
                %v456 = vld [vmem:[%s152 + $0x968] sm:%s145]
                %457 = vst [vmem:[%s153 + $0x4b8] sm:%s145] %v456
                %v458 = vld [vmem:[%s152 + $0x970] sm:%s145]
                %459 = vst [vmem:[%s153 + $0x4c0] sm:%s145] %v458
                %v460 = vld [vmem:[%s152 + $0x978] sm:%s145]
                %461 = vst [vmem:[%s153 + $0x4c8] sm:%s145] %v460
                %v462 = vld [vmem:[%s152 + $0x980] sm:%s145]
                %463 = vst [vmem:[%s153 + $0x4d0] sm:%s145] %v462
                %v464 = vld [vmem:[%s152 + $0x988] sm:%s145]
                %465 = vst [vmem:[%s153 + $0x4d8] sm:%s145] %v464
                %v466 = vld [vmem:[%s152 + $0x990] sm:%s145]
                %467 = vst [vmem:[%s153 + $0x4e0] sm:%s145] %v466
                %v468 = vld [vmem:[%s152 + $0x998] sm:%s145]
                %469 = vst [vmem:[%s153 + $0x4e8] sm:%s145] %v468
                %v470 = vld [vmem:[%s152 + $0x9a0] sm:%s145]
                %471 = vst [vmem:[%s153 + $0x4f0] sm:%s145] %v470
                %v472 = vld [vmem:[%s152 + $0x9a8] sm:%s145]
                %473 = vst [vmem:[%s153 + $0x4f8] sm:%s145] %v472
                %v474 = vld [vmem:[%s152 + $0x9b0] sm:%s145]
                %475 = vst [vmem:[%s153 + $0x500] sm:%s145] %v474
                %v476 = vld [vmem:[%s152 + $0x9b8] sm:%s145]
                %477 = vst [vmem:[%s153 + $0x508] sm:%s145] %v476
                %v478 = vld [vmem:[%s152 + $0x9c0] sm:%s145]
                %479 = vst [vmem:[%s153 + $0x510] sm:%s145] %v478
                %v480 = vld [vmem:[%s152 + $0x9c8] sm:%s145]
                %481 = vst [vmem:[%s153 + $0x518] sm:%s145] %v480
                %v482 = vld [vmem:[%s152 + $0x9d0] sm:%s145]
                %483 = vst [vmem:[%s153 + $0x520] sm:%s145] %v482
                %v484 = vld [vmem:[%s152 + $0x9d8] sm:%s145]
                %485 = vst [vmem:[%s153 + $0x528] sm:%s145] %v484
                %v486 = vld [vmem:[%s152 + $0x9e0] sm:%s145]
                %487 = vst [vmem:[%s153 + $0x530] sm:%s145] %v486
                %v488 = vld [vmem:[%s152 + $0x9e8] sm:%s145]
                %489 = vst [vmem:[%s153 + $0x538] sm:%s145] %v488
                %v490 = vld [vmem:[%s152 + $0x9f0] sm:%s145]
                %491 = vst [vmem:[%s153 + $0x540] sm:%s145] %v490
                %v492 = vld [vmem:[%s152 + $0x9f8] sm:%s145]
                %493 = vst [vmem:[%s153 + $0x548] sm:%s145] %v492
                %v494 = vld [vmem:[%s152 + $0xa00] sm:%s145]
                %495 = vst [vmem:[%s153 + $0x550] sm:%s145] %v494
                %v496 = vld [vmem:[%s152 + $0xa08] sm:%s145]
                %497 = vst [vmem:[%s153 + $0x558] sm:%s145] %v496
                %v498 = vld [vmem:[%s152 + $0xa10] sm:%s145]
                %499 = vst [vmem:[%s153 + $0x560] sm:%s145] %v498
                %v500 = vld [vmem:[%s152 + $0xa18] sm:%s145]
                %501 = vst [vmem:[%s153 + $0x568] sm:%s145] %v500
                %v502 = vld [vmem:[%s152 + $0xa20] sm:%s145]
                %503 = vst [vmem:[%s153 + $0x570] sm:%s145] %v502
                %v504 = vld [vmem:[%s152 + $0xa28] sm:%s145]
                %505 = vst [vmem:[%s153 + $0x578] sm:%s145] %v504
                %v506 = vld [vmem:[%s152 + $0xa30] sm:%s145]
                %507 = vst [vmem:[%s153 + $0x580] sm:%s145] %v506
                %v508 = vld [vmem:[%s152 + $0xa38] sm:%s145]
                %509 = vst [vmem:[%s153 + $0x588] sm:%s145] %v508
                %v510 = vld [vmem:[%s152 + $0xa40] sm:%s145]
                %511 = vst [vmem:[%s153 + $0x590] sm:%s145] %v510
                %v512 = vld [vmem:[%s152 + $0xa48] sm:%s145]
                %513 = vst [vmem:[%s153 + $0x598] sm:%s145] %v512
                %v514 = vld [vmem:[%s152 + $0xa50] sm:%s145]
                %515 = vst [vmem:[%s153 + $0x5a0] sm:%s145] %v514
                %v516 = vld [vmem:[%s152 + $0xa58] sm:%s145]
                %517 = vst [vmem:[%s153 + $0x5a8] sm:%s145] %v516
                %v518 = vld [vmem:[%s152 + $0xa60] sm:%s145]
                %519 = vst [vmem:[%s153 + $0x5b0] sm:%s145] %v518
                %v520 = vld [vmem:[%s152 + $0xa68] sm:%s145]
                %521 = vst [vmem:[%s153 + $0x5b8] sm:%s145] %v520
                %v522 = vld [vmem:[%s152 + $0xa70] sm:%s145]
                %523 = vst [vmem:[%s153 + $0x5c0] sm:%s145] %v522
                %v524 = vld [vmem:[%s152 + $0xa78] sm:%s145]
                %525 = vst [vmem:[%s153 + $0x5c8] sm:%s145] %v524
                %v526 = vld [vmem:[%s152 + $0xa80] sm:%s145]
                %527 = vst [vmem:[%s153 + $0x5d0] sm:%s145] %v526
                %v528 = vld [vmem:[%s152 + $0xa88] sm:%s145]
                %529 = vst [vmem:[%s153 + $0x5d8] sm:%s145] %v528
                %v530 = vld [vmem:[%s152 + $0xa90] sm:%s145]
                %531 = vst [vmem:[%s153 + $0x5e0] sm:%s145] %v530
                %v532 = vld [vmem:[%s152 + $0xa98] sm:%s145]
                %533 = vst [vmem:[%s153 + $0x5e8] sm:%s145] %v532
                %v534 = vld [vmem:[%s152 + $0xaa0] sm:%s145]
                %535 = vst [vmem:[%s153 + $0x5f0] sm:%s145] %v534
                %v536 = vld [vmem:[%s152 + $0xaa8] sm:%s145]
                %537 = vst [vmem:[%s153 + $0x5f8] sm:%s145] %v536
                %v538 = vld [vmem:[%s152 + $0xab0] sm:%s145]
                %539 = vst [vmem:[%s153 + $0x600] sm:%s145] %v538
                %v540 = vld [vmem:[%s152 + $0xab8] sm:%s145]
                %541 = vst [vmem:[%s153 + $0x608] sm:%s145] %v540
                %v542 = vld [vmem:[%s152 + $0xac0] sm:%s145]
                %543 = vst [vmem:[%s153 + $0x610] sm:%s145] %v542
                %v544 = vld [vmem:[%s152 + $0xac8] sm:%s145]
                %545 = vst [vmem:[%s153 + $0x618] sm:%s145] %v544
                %v546 = vld [vmem:[%s152 + $0xad0] sm:%s145]
                %547 = vst [vmem:[%s153 + $0x620] sm:%s145] %v546
                %v548 = vld [vmem:[%s152 + $0xad8] sm:%s145]
                %549 = vst [vmem:[%s153 + $0x628] sm:%s145] %v548
                %v550 = vld [vmem:[%s152 + $0xae0] sm:%s145]
                %551 = vst [vmem:[%s153 + $0x630] sm:%s145] %v550
                %v552 = vld [vmem:[%s152 + $0xae8] sm:%s145]
                %553 = vst [vmem:[%s153 + $0x638] sm:%s145] %v552
              $region45: #{tpu_custom_call.1} parent=39 // loop_footer
                %s151 = sadd.s32 1, %s147
              $region46: #{tpu_custom_call.1} parent=39 // loop_footer_branch
                %146 = sbr.rel target = $region42
              $region47: #{tpu_custom_call.1} parent=39 // loop_exit
                _
            $region40: #{tpu_custom_call.1} parent=31 // pred_fallthru
              _
          $region32: #{tpu_custom_call.1} parent=27 // pred_fallthru
            _
          %966 = vnop
        $region28: #{tpu_custom_call.1} parent=23 // pred_fallthru
          _
      $region24: #{tpu_custom_call.1} parent=5 // pred_fallthru
        _
      %p967 = scmp.le.s32.totalorder 1, %s9
      %p968 = scmp.lt.s32.totalorder %s9, 3
      %p969 = pnand %p967, %p968
      %p970 = pneg %p969
      // Predicated region
      $region63: #{tpu_custom_call.1} parent=5 // pred_check
        _
      $region64: #{tpu_custom_call.1} parent=5 // pred_check_branch
        %972 = sbr.rel (%p969) target = $region66
      $region65: #{tpu_custom_call.1} parent=5 // pred_region
        %s973 = ssub.s32 %s9, 1
        %s974 = sand.u32 %s22, 1
        %s975 = sand.u32 %s22, 1
        %s976 = smul.addr %s975, 1600
        %s977 = scalar_lea.vmem [#allocation2], %s976
        // Predicated region
        $region67: #{tpu_custom_call.1} parent=65 // pred_check
          %p978 = pneg %p35
        $region68: #{tpu_custom_call.1} parent=65 // pred_check_branch
          %980 = sbr.rel (%p978) target = $region70
        $region69: #{tpu_custom_call.1} parent=65 // pred_region
          _
        $region70: #{tpu_custom_call.1} parent=65 // pred_fallthru
          _
        %s981 = sand.u32 %s22, 1
        %s982 = sand.u32 %s22, 1
        %s983 = smul.addr %s982, 1600
        %s984 = scalar_lea.vmem [#allocation2], %s983
        %p985 = pneg %p35
        %p986 = pneg %p32
        %p987 = pneg %p56
        %p988 = pneg %p53
        %p989 = pneg %p77
        %p990 = pneg %p74
        %p991 = pneg %p103
        %p992 = pneg %p100
        %s993 = smul.u32 50, %s14
        %p994 = scmp.lt.s32.totalorder %s993, 99
        %s995 = scalar_select %p994, %s993, 99
        %s996 = smul.addr %s995, 8
        %s997 = scalar_lea.vmem %s3, %s996
        %s998 = smul.u32 50, %s14
        %s999 = smul.u32 50, %s14
        %p1000 = scmp.lt.s32.totalorder %s999, 99
        %s1001 = scalar_select %p1000, %s999, 99
        %s1002 = smul.addr %s1001, 8
        %s1003 = scalar_lea.vmem %s3, %s1002
        %s1004 = smul.u32 50, %s14
        %v1005 = vld [vmem:[%s1] sm:$0xff]
        %v1006 = vld [vmem:[%s1 + $0x8] sm:$0xff]
        %v1007 = vld [vmem:[%s1 + $0x10] sm:$0xff]
        %v1008 = vld [vmem:[%s1 + $0x18] sm:$0x1]
        %v1009 = vld [vmem:[%s977] sm:$0xff]
        %v1010 = vld [vmem:[%s977 + $0x8] sm:$0xff]
        %v1011 = vld [vmem:[%s977 + $0x10] sm:$0xff]
        %v1012 = vld [vmem:[%s977 + $0x18] sm:$0xff]
        %v1013 = vld [vmem:[%s977 + $0x20] sm:$0xff]
        %v1014 = vld [vmem:[%s977 + $0x28] sm:$0xff]
        %v1015 = vld [vmem:[%s977 + $0x30] sm:$0xff]
        %v1016 = vld [vmem:[%s977 + $0x38] sm:$0xff]
        %v1017 = vld [vmem:[%s977 + $0x40] sm:$0xff]
        %v1018 = vld [vmem:[%s977 + $0x48] sm:$0xff]
        %v1019 = vld [vmem:[%s977 + $0x50] sm:$0xff]
        %v1020 = vld [vmem:[%s977 + $0x58] sm:$0xff]
        %v1021 = vld [vmem:[%s977 + $0x60] sm:$0xff]
        %v1022 = vld [vmem:[%s977 + $0x68] sm:$0xff]
        %v1023 = vld [vmem:[%s977 + $0x70] sm:$0xff]
        %v1024 = vld [vmem:[%s977 + $0x78] sm:$0xff]
        %v1025 = vld [vmem:[%s977 + $0x80] sm:$0xff]
        %v1026 = vld [vmem:[%s977 + $0x88] sm:$0xff]
        %v1027 = vld [vmem:[%s977 + $0x90] sm:$0xff]
        %v1028 = vld [vmem:[%s977 + $0x98] sm:$0xff]
        %v1029 = vld [vmem:[%s977 + $0xa0] sm:$0xff]
        %v1030 = vld [vmem:[%s977 + $0xa8] sm:$0xff]
        %v1031 = vld [vmem:[%s977 + $0xb0] sm:$0xff]
        %v1032 = vld [vmem:[%s977 + $0xb8] sm:$0xff]
        %v1033 = vld [vmem:[%s977 + $0xc0] sm:$0xff]
        %v1034 = vld [vmem:[%s977 + $0xc8] sm:$0xff]
        %v1035 = vld [vmem:[%s977 + $0xd0] sm:$0xff]
        %v1036 = vld [vmem:[%s977 + $0xd8] sm:$0xff]
        %v1037 = vld [vmem:[%s977 + $0xe0] sm:$0xff]
        %v1038 = vld [vmem:[%s977 + $0xe8] sm:$0xff]
        %v1039 = vld [vmem:[%s977 + $0xf0] sm:$0xff]
        %v1040 = vld [vmem:[%s977 + $0xf8] sm:$0xff]
        %v1041 = vld [vmem:[%s977 + $0x100] sm:$0xff]
        %v1042 = vld [vmem:[%s977 + $0x108] sm:$0xff]
        %v1043 = vld [vmem:[%s977 + $0x110] sm:$0xff]
        %v1044 = vld [vmem:[%s977 + $0x118] sm:$0xff]
        %v1045 = vld [vmem:[%s977 + $0x120] sm:$0xff]
        %v1046 = vld [vmem:[%s977 + $0x128] sm:$0xff]
        %v1047 = vld [vmem:[%s977 + $0x130] sm:$0xff]
        %v1048 = vld [vmem:[%s977 + $0x138] sm:$0xff]
        %v1049 = vld [vmem:[%s977 + $0x140] sm:$0xff]
        %v1050 = vld [vmem:[%s977 + $0x148] sm:$0xff]
        %v1051 = vld [vmem:[%s977 + $0x150] sm:$0xff]
        %v1052 = vld [vmem:[%s977 + $0x158] sm:$0xff]
        %v1053 = vld [vmem:[%s977 + $0x160] sm:$0xff]
        %v1054 = vld [vmem:[%s977 + $0x168] sm:$0xff]
        %v1055 = vld [vmem:[%s977 + $0x170] sm:$0xff]
        %v1056 = vld [vmem:[%s977 + $0x178] sm:$0xff]
        %v1057 = vld [vmem:[%s977 + $0x180] sm:$0xff]
        %v1058 = vld [vmem:[%s977 + $0x188] sm:$0xff]
        %vm1059 = vcmask 203776
        %v1061 = vsel %vm1059, %v1009, 0
        %v1064 = vsel %vm1059, %v1010, 0
        %v1067 = vsel %vm1059, %v1011, 0
        %v1070 = vsel %vm1059, %v1012, 0
        %v1073 = vsel %vm1059, %v1013, 0
        %v1076 = vsel %vm1059, %v1014, 0
        %v1079 = vsel %vm1059, %v1015, 0
        %v1082 = vsel %vm1059, %v1016, 0
        %v1085 = vsel %vm1059, %v1017, 0
        %v1088 = vsel %vm1059, %v1018, 0
        %v1091 = vsel %vm1059, %v1019, 0
        %v1094 = vsel %vm1059, %v1020, 0
        %v1097 = vsel %vm1059, %v1021, 0
        %v1100 = vsel %vm1059, %v1022, 0
        %v1103 = vsel %vm1059, %v1023, 0
        %v1106 = vsel %vm1059, %v1024, 0
        %v1109 = vsel %vm1059, %v1025, 0
        %v1112 = vsel %vm1059, %v1026, 0
        %v1115 = vsel %vm1059, %v1027, 0
        %v1118 = vsel %vm1059, %v1028, 0
        %v1121 = vsel %vm1059, %v1029, 0
        %v1124 = vsel %vm1059, %v1030, 0
        %v1127 = vsel %vm1059, %v1031, 0
        %v1130 = vsel %vm1059, %v1032, 0
        %v1133 = vsel %vm1059, %v1033, 0
        %v1136 = vsel %vm1059, %v1034, 0
        %v1139 = vsel %vm1059, %v1035, 0
        %v1142 = vsel %vm1059, %v1036, 0
        %v1145 = vsel %vm1059, %v1037, 0
        %v1148 = vsel %vm1059, %v1038, 0
        %v1151 = vsel %vm1059, %v1039, 0
        %v1154 = vsel %vm1059, %v1040, 0
        %v1157 = vsel %vm1059, %v1041, 0
        %v1160 = vsel %vm1059, %v1042, 0
        %v1163 = vsel %vm1059, %v1043, 0
        %v1166 = vsel %vm1059, %v1044, 0
        %v1169 = vsel %vm1059, %v1045, 0
        %v1172 = vsel %vm1059, %v1046, 0
        %v1175 = vsel %vm1059, %v1047, 0
        %v1178 = vsel %vm1059, %v1048, 0
        %v1181 = vsel %vm1059, %v1049, 0
        %v1184 = vsel %vm1059, %v1050, 0
        %v1187 = vsel %vm1059, %v1051, 0
        %v1190 = vsel %vm1059, %v1052, 0
        %v1193 = vsel %vm1059, %v1053, 0
        %v1196 = vsel %vm1059, %v1054, 0
        %v1199 = vsel %vm1059, %v1055, 0
        %v1202 = vsel %vm1059, %v1056, 0
        %v1205 = vsel %vm1059, %v1057, 0
        %v1208 = vsel %vm1059, %v1058, 0
        %vm1210 = vcmask 1040384
        %v1212 = vsel %vm1210, %v1008, 0
        %1214 = vmatpush.msra.mxu0 0.0
        %1215 = vmatpush.msra.mxu0 0.0
        %1216 = vmatpush.msra.mxu0 0.0
        %1217 = vmatpush.msra.mxu0 0.0
        %1218 = vmatpush.msra.mxu0 0.0
        %1219 = vmatpush.msra.mxu0 0.0
        %1220 = vmatpush.msra.mxu0 0.0
        %1221 = vmatpush.msra.mxu0 0.0
        %1222 = vmatpush.msra.mxu0 0.0
        %1223 = vmatpush.msra.mxu0 0.0
        %1224 = vmatpush.msra.mxu0 0.0
        %1225 = vmatpush.msra.mxu0 0.0
        %1226 = vmatpush.msra.mxu0 %v1212
        %1227 = vmatpush.msra.mxu0 %v1007
        %1228 = vmatpush.msra.mxu0 %v1006
        %1229 = vmatpush.msra.mxu0 %v1005
        %1230 = vmatmul.f32.gmra.mxu0 %v1061
        %v1231 = vpop.f32.mrf.mxu0
        %v1232 = vadd.f32 0.0, %v1231
        %1233 = vmatmul.f32.gmra.mxu0 %v1064
        %v1234 = vpop.f32.mrf.mxu0
        %v1235 = vadd.f32 0.0, %v1234
        %1236 = vmatmul.f32.gmra.mxu0 %v1067
        %v1237 = vpop.f32.mrf.mxu0
        %v1238 = vadd.f32 0.0, %v1237
        %1239 = vmatmul.f32.gmra.mxu0 %v1070
        %v1240 = vpop.f32.mrf.mxu0
        %v1241 = vadd.f32 0.0, %v1240
        %1242 = vmatmul.f32.gmra.mxu0 %v1073
        %v1243 = vpop.f32.mrf.mxu0
        %v1244 = vadd.f32 0.0, %v1243
        %1245 = vmatmul.f32.gmra.mxu0 %v1076
        %v1246 = vpop.f32.mrf.mxu0
        %v1247 = vadd.f32 0.0, %v1246
        %1248 = vmatmul.f32.gmra.mxu0 %v1079
        %v1249 = vpop.f32.mrf.mxu0
        %v1250 = vadd.f32 0.0, %v1249
        %1251 = vmatmul.f32.gmra.mxu0 %v1082
        %v1252 = vpop.f32.mrf.mxu0
        %v1253 = vadd.f32 0.0, %v1252
        %1254 = vmatmul.f32.gmra.mxu0 %v1085
        %v1255 = vpop.f32.mrf.mxu0
        %v1256 = vadd.f32 0.0, %v1255
        %1257 = vmatmul.f32.gmra.mxu0 %v1088
        %v1258 = vpop.f32.mrf.mxu0
        %v1259 = vadd.f32 0.0, %v1258
        %1260 = vmatmul.f32.gmra.mxu0 %v1091
        %v1261 = vpop.f32.mrf.mxu0
        %v1262 = vadd.f32 0.0, %v1261
        %1263 = vmatmul.f32.gmra.mxu0 %v1094
        %v1264 = vpop.f32.mrf.mxu0
        %v1265 = vadd.f32 0.0, %v1264
        %1266 = vmatmul.f32.gmra.mxu0 %v1097
        %v1267 = vpop.f32.mrf.mxu0
        %v1268 = vadd.f32 0.0, %v1267
        %1269 = vmatmul.f32.gmra.mxu0 %v1100
        %v1270 = vpop.f32.mrf.mxu0
        %v1271 = vadd.f32 0.0, %v1270
        %1272 = vmatmul.f32.gmra.mxu0 %v1103
        %v1273 = vpop.f32.mrf.mxu0
        %v1274 = vadd.f32 0.0, %v1273
        %1275 = vmatmul.f32.gmra.mxu0 %v1106
        %v1276 = vpop.f32.mrf.mxu0
        %v1277 = vadd.f32 0.0, %v1276
        %1278 = vmatmul.f32.gmra.mxu0 %v1109
        %v1279 = vpop.f32.mrf.mxu0
        %v1280 = vadd.f32 0.0, %v1279
        %1281 = vmatmul.f32.gmra.mxu0 %v1112
        %v1282 = vpop.f32.mrf.mxu0
        %v1283 = vadd.f32 0.0, %v1282
        %1284 = vmatmul.f32.gmra.mxu0 %v1115
        %v1285 = vpop.f32.mrf.mxu0
        %v1286 = vadd.f32 0.0, %v1285
        %1287 = vmatmul.f32.gmra.mxu0 %v1118
        %v1288 = vpop.f32.mrf.mxu0
        %v1289 = vadd.f32 0.0, %v1288
        %1290 = vmatmul.f32.gmra.mxu0 %v1121
        %v1291 = vpop.f32.mrf.mxu0
        %v1292 = vadd.f32 0.0, %v1291
        %1293 = vmatmul.f32.gmra.mxu0 %v1124
        %v1294 = vpop.f32.mrf.mxu0
        %v1295 = vadd.f32 0.0, %v1294
        %1296 = vmatmul.f32.gmra.mxu0 %v1127
        %v1297 = vpop.f32.mrf.mxu0
        %v1298 = vadd.f32 0.0, %v1297
        %1299 = vmatmul.f32.gmra.mxu0 %v1130
        %v1300 = vpop.f32.mrf.mxu0
        %v1301 = vadd.f32 0.0, %v1300
        %1302 = vmatmul.f32.gmra.mxu0 %v1133
        %v1303 = vpop.f32.mrf.mxu0
        %v1304 = vadd.f32 0.0, %v1303
        %1305 = vmatmul.f32.gmra.mxu0 %v1136
        %v1306 = vpop.f32.mrf.mxu0
        %v1307 = vadd.f32 0.0, %v1306
        %1308 = vmatmul.f32.gmra.mxu0 %v1139
        %v1309 = vpop.f32.mrf.mxu0
        %v1310 = vadd.f32 0.0, %v1309
        %1311 = vmatmul.f32.gmra.mxu0 %v1142
        %v1312 = vpop.f32.mrf.mxu0
        %v1313 = vadd.f32 0.0, %v1312
        %1314 = vmatmul.f32.gmra.mxu0 %v1145
        %v1315 = vpop.f32.mrf.mxu0
        %v1316 = vadd.f32 0.0, %v1315
        %1317 = vmatmul.f32.gmra.mxu0 %v1148
        %v1318 = vpop.f32.mrf.mxu0
        %v1319 = vadd.f32 0.0, %v1318
        %1320 = vmatmul.f32.gmra.mxu0 %v1151
        %v1321 = vpop.f32.mrf.mxu0
        %v1322 = vadd.f32 0.0, %v1321
        %1323 = vmatmul.f32.gmra.mxu0 %v1154
        %v1324 = vpop.f32.mrf.mxu0
        %v1325 = vadd.f32 0.0, %v1324
        %1326 = vmatmul.f32.gmra.mxu0 %v1157
        %v1327 = vpop.f32.mrf.mxu0
        %v1328 = vadd.f32 0.0, %v1327
        %1329 = vmatmul.f32.gmra.mxu0 %v1160
        %v1330 = vpop.f32.mrf.mxu0
        %v1331 = vadd.f32 0.0, %v1330
        %1332 = vmatmul.f32.gmra.mxu0 %v1163
        %v1333 = vpop.f32.mrf.mxu0
        %v1334 = vadd.f32 0.0, %v1333
        %1335 = vmatmul.f32.gmra.mxu0 %v1166
        %v1336 = vpop.f32.mrf.mxu0
        %v1337 = vadd.f32 0.0, %v1336
        %1338 = vmatmul.f32.gmra.mxu0 %v1169
        %v1339 = vpop.f32.mrf.mxu0
        %v1340 = vadd.f32 0.0, %v1339
        %1341 = vmatmul.f32.gmra.mxu0 %v1172
        %v1342 = vpop.f32.mrf.mxu0
        %v1343 = vadd.f32 0.0, %v1342
        %1344 = vmatmul.f32.gmra.mxu0 %v1175
        %v1345 = vpop.f32.mrf.mxu0
        %v1346 = vadd.f32 0.0, %v1345
        %1347 = vmatmul.f32.gmra.mxu0 %v1178
        %v1348 = vpop.f32.mrf.mxu0
        %v1349 = vadd.f32 0.0, %v1348
        %1350 = vmatmul.f32.gmra.mxu0 %v1181
        %v1351 = vpop.f32.mrf.mxu0
        %v1352 = vadd.f32 0.0, %v1351
        %1353 = vmatmul.f32.gmra.mxu0 %v1184
        %v1354 = vpop.f32.mrf.mxu0
        %v1355 = vadd.f32 0.0, %v1354
        %1356 = vmatmul.f32.gmra.mxu0 %v1187
        %v1357 = vpop.f32.mrf.mxu0
        %v1358 = vadd.f32 0.0, %v1357
        %1359 = vmatmul.f32.gmra.mxu0 %v1190
        %v1360 = vpop.f32.mrf.mxu0
        %v1361 = vadd.f32 0.0, %v1360
        %1362 = vmatmul.f32.gmra.mxu0 %v1193
        %v1363 = vpop.f32.mrf.mxu0
        %v1364 = vadd.f32 0.0, %v1363
        %1365 = vmatmul.f32.gmra.mxu0 %v1196
        %v1366 = vpop.f32.mrf.mxu0
        %v1367 = vadd.f32 0.0, %v1366
        %1368 = vmatmul.f32.gmra.mxu0 %v1199
        %v1369 = vpop.f32.mrf.mxu0
        %v1370 = vadd.f32 0.0, %v1369
        %1371 = vmatmul.f32.gmra.mxu0 %v1202
        %v1372 = vpop.f32.mrf.mxu0
        %v1373 = vadd.f32 0.0, %v1372
        %1374 = vmatmul.f32.gmra.mxu0 %v1205
        %v1375 = vpop.f32.mrf.mxu0
        %v1376 = vadd.f32 0.0, %v1375
        %1377 = vmatmul.f32.gmra.mxu0 %v1208
        %v1378 = vpop.f32.mrf.mxu0
        %v1379 = vadd.f32 0.0, %v1378
        %1380 = vdwg.mxu0
        %s1381 = scalar_lea.vmem %s977, 400 [#allocation2]
        %v1382 = vld [vmem:[%s1381] sm:$0xff]
        %v1383 = vld [vmem:[%s1381 + $0x8] sm:$0xff]
        %v1384 = vld [vmem:[%s1381 + $0x10] sm:$0xff]
        %v1385 = vld [vmem:[%s1381 + $0x18] sm:$0xff]
        %v1386 = vld [vmem:[%s1381 + $0x20] sm:$0xff]
        %v1387 = vld [vmem:[%s1381 + $0x28] sm:$0xff]
        %v1388 = vld [vmem:[%s1381 + $0x30] sm:$0xff]
        %v1389 = vld [vmem:[%s1381 + $0x38] sm:$0xff]
        %v1390 = vld [vmem:[%s1381 + $0x40] sm:$0xff]
        %v1391 = vld [vmem:[%s1381 + $0x48] sm:$0xff]
        %v1392 = vld [vmem:[%s1381 + $0x50] sm:$0xff]
        %v1393 = vld [vmem:[%s1381 + $0x58] sm:$0xff]
        %v1394 = vld [vmem:[%s1381 + $0x60] sm:$0xff]
        %v1395 = vld [vmem:[%s1381 + $0x68] sm:$0xff]
        %v1396 = vld [vmem:[%s1381 + $0x70] sm:$0xff]
        %v1397 = vld [vmem:[%s1381 + $0x78] sm:$0xff]
        %v1398 = vld [vmem:[%s1381 + $0x80] sm:$0xff]
        %v1399 = vld [vmem:[%s1381 + $0x88] sm:$0xff]
        %v1400 = vld [vmem:[%s1381 + $0x90] sm:$0xff]
        %v1401 = vld [vmem:[%s1381 + $0x98] sm:$0xff]
        %v1402 = vld [vmem:[%s1381 + $0xa0] sm:$0xff]
        %v1403 = vld [vmem:[%s1381 + $0xa8] sm:$0xff]
        %v1404 = vld [vmem:[%s1381 + $0xb0] sm:$0xff]
        %v1405 = vld [vmem:[%s1381 + $0xb8] sm:$0xff]
        %v1406 = vld [vmem:[%s1381 + $0xc0] sm:$0xff]
        %v1407 = vld [vmem:[%s1381 + $0xc8] sm:$0xff]
        %v1408 = vld [vmem:[%s1381 + $0xd0] sm:$0xff]
        %v1409 = vld [vmem:[%s1381 + $0xd8] sm:$0xff]
        %v1410 = vld [vmem:[%s1381 + $0xe0] sm:$0xff]
        %v1411 = vld [vmem:[%s1381 + $0xe8] sm:$0xff]
        %v1412 = vld [vmem:[%s1381 + $0xf0] sm:$0xff]
        %v1413 = vld [vmem:[%s1381 + $0xf8] sm:$0xff]
        %v1414 = vld [vmem:[%s1381 + $0x100] sm:$0xff]
        %v1415 = vld [vmem:[%s1381 + $0x108] sm:$0xff]
        %v1416 = vld [vmem:[%s1381 + $0x110] sm:$0xff]
        %v1417 = vld [vmem:[%s1381 + $0x118] sm:$0xff]
        %v1418 = vld [vmem:[%s1381 + $0x120] sm:$0xff]
        %v1419 = vld [vmem:[%s1381 + $0x128] sm:$0xff]
        %v1420 = vld [vmem:[%s1381 + $0x130] sm:$0xff]
        %v1421 = vld [vmem:[%s1381 + $0x138] sm:$0xff]
        %v1422 = vld [vmem:[%s1381 + $0x140] sm:$0xff]
        %v1423 = vld [vmem:[%s1381 + $0x148] sm:$0xff]
        %v1424 = vld [vmem:[%s1381 + $0x150] sm:$0xff]
        %v1425 = vld [vmem:[%s1381 + $0x158] sm:$0xff]
        %v1426 = vld [vmem:[%s1381 + $0x160] sm:$0xff]
        %v1427 = vld [vmem:[%s1381 + $0x168] sm:$0xff]
        %v1428 = vld [vmem:[%s1381 + $0x170] sm:$0xff]
        %v1429 = vld [vmem:[%s1381 + $0x178] sm:$0xff]
        %v1430 = vld [vmem:[%s1381 + $0x180] sm:$0xff]
        %v1431 = vld [vmem:[%s1381 + $0x188] sm:$0xff]
        %v1433 = vsel %vm1059, %v1382, 0
        %v1436 = vsel %vm1059, %v1383, 0
        %v1439 = vsel %vm1059, %v1384, 0
        %v1442 = vsel %vm1059, %v1385, 0
        %v1445 = vsel %vm1059, %v1386, 0
        %v1448 = vsel %vm1059, %v1387, 0
        %v1451 = vsel %vm1059, %v1388, 0
        %v1454 = vsel %vm1059, %v1389, 0
        %v1457 = vsel %vm1059, %v1390, 0
        %v1460 = vsel %vm1059, %v1391, 0
        %v1463 = vsel %vm1059, %v1392, 0
        %v1466 = vsel %vm1059, %v1393, 0
        %v1469 = vsel %vm1059, %v1394, 0
        %v1472 = vsel %vm1059, %v1395, 0
        %v1475 = vsel %vm1059, %v1396, 0
        %v1478 = vsel %vm1059, %v1397, 0
        %v1481 = vsel %vm1059, %v1398, 0
        %v1484 = vsel %vm1059, %v1399, 0
        %v1487 = vsel %vm1059, %v1400, 0
        %v1490 = vsel %vm1059, %v1401, 0
        %v1493 = vsel %vm1059, %v1402, 0
        %v1496 = vsel %vm1059, %v1403, 0
        %v1499 = vsel %vm1059, %v1404, 0
        %v1502 = vsel %vm1059, %v1405, 0
        %v1505 = vsel %vm1059, %v1406, 0
        %v1508 = vsel %vm1059, %v1407, 0
        %v1511 = vsel %vm1059, %v1408, 0
        %v1514 = vsel %vm1059, %v1409, 0
        %v1517 = vsel %vm1059, %v1410, 0
        %v1520 = vsel %vm1059, %v1411, 0
        %v1523 = vsel %vm1059, %v1412, 0
        %v1526 = vsel %vm1059, %v1413, 0
        %v1529 = vsel %vm1059, %v1414, 0
        %v1532 = vsel %vm1059, %v1415, 0
        %v1535 = vsel %vm1059, %v1416, 0
        %v1538 = vsel %vm1059, %v1417, 0
        %v1541 = vsel %vm1059, %v1418, 0
        %v1544 = vsel %vm1059, %v1419, 0
        %v1547 = vsel %vm1059, %v1420, 0
        %v1550 = vsel %vm1059, %v1421, 0
        %v1553 = vsel %vm1059, %v1422, 0
        %v1556 = vsel %vm1059, %v1423, 0
        %v1559 = vsel %vm1059, %v1424, 0
        %v1562 = vsel %vm1059, %v1425, 0
        %v1565 = vsel %vm1059, %v1426, 0
        %v1568 = vsel %vm1059, %v1427, 0
        %v1571 = vsel %vm1059, %v1428, 0
        %v1574 = vsel %vm1059, %v1429, 0
        %v1577 = vsel %vm1059, %v1430, 0
        %v1580 = vsel %vm1059, %v1431, 0
        %1582 = vmatpush.msra.mxu0 0.0
        %1583 = vmatpush.msra.mxu0 0.0
        %1584 = vmatpush.msra.mxu0 0.0
        %1585 = vmatpush.msra.mxu0 0.0
        %1586 = vmatpush.msra.mxu0 0.0
        %1587 = vmatpush.msra.mxu0 0.0
        %1588 = vmatpush.msra.mxu0 0.0
        %1589 = vmatpush.msra.mxu0 0.0
        %1590 = vmatpush.msra.mxu0 0.0
        %1591 = vmatpush.msra.mxu0 0.0
        %1592 = vmatpush.msra.mxu0 0.0
        %1593 = vmatpush.msra.mxu0 0.0
        %1594 = vmatpush.msra.mxu0 %v1212
        %1595 = vmatpush.msra.mxu0 %v1007
        %1596 = vmatpush.msra.mxu0 %v1006
        %1597 = vmatpush.msra.mxu0 %v1005
        %1598 = vmatmul.f32.gmra.mxu0 %v1433
        %v1599 = vpop.f32.mrf.mxu0
        %v1600 = vadd.f32 0.0, %v1599
        %1601 = vmatmul.f32.gmra.mxu0 %v1436
        %v1602 = vpop.f32.mrf.mxu0
        %v1603 = vadd.f32 0.0, %v1602
        %1604 = vmatmul.f32.gmra.mxu0 %v1439
        %v1605 = vpop.f32.mrf.mxu0
        %v1606 = vadd.f32 0.0, %v1605
        %1607 = vmatmul.f32.gmra.mxu0 %v1442
        %v1608 = vpop.f32.mrf.mxu0
        %v1609 = vadd.f32 0.0, %v1608
        %1610 = vmatmul.f32.gmra.mxu0 %v1445
        %v1611 = vpop.f32.mrf.mxu0
        %v1612 = vadd.f32 0.0, %v1611
        %1613 = vmatmul.f32.gmra.mxu0 %v1448
        %v1614 = vpop.f32.mrf.mxu0
        %v1615 = vadd.f32 0.0, %v1614
        %1616 = vmatmul.f32.gmra.mxu0 %v1451
        %v1617 = vpop.f32.mrf.mxu0
        %v1618 = vadd.f32 0.0, %v1617
        %1619 = vmatmul.f32.gmra.mxu0 %v1454
        %v1620 = vpop.f32.mrf.mxu0
        %v1621 = vadd.f32 0.0, %v1620
        %1622 = vmatmul.f32.gmra.mxu0 %v1457
        %v1623 = vpop.f32.mrf.mxu0
        %v1624 = vadd.f32 0.0, %v1623
        %1625 = vmatmul.f32.gmra.mxu0 %v1460
        %v1626 = vpop.f32.mrf.mxu0
        %v1627 = vadd.f32 0.0, %v1626
        %1628 = vmatmul.f32.gmra.mxu0 %v1463
        %v1629 = vpop.f32.mrf.mxu0
        %v1630 = vadd.f32 0.0, %v1629
        %1631 = vmatmul.f32.gmra.mxu0 %v1466
        %v1632 = vpop.f32.mrf.mxu0
        %v1633 = vadd.f32 0.0, %v1632
        %1634 = vmatmul.f32.gmra.mxu0 %v1469
        %v1635 = vpop.f32.mrf.mxu0
        %v1636 = vadd.f32 0.0, %v1635
        %1637 = vmatmul.f32.gmra.mxu0 %v1472
        %v1638 = vpop.f32.mrf.mxu0
        %v1639 = vadd.f32 0.0, %v1638
        %1640 = vmatmul.f32.gmra.mxu0 %v1475
        %v1641 = vpop.f32.mrf.mxu0
        %v1642 = vadd.f32 0.0, %v1641
        %1643 = vmatmul.f32.gmra.mxu0 %v1478
        %v1644 = vpop.f32.mrf.mxu0
        %v1645 = vadd.f32 0.0, %v1644
        %1646 = vmatmul.f32.gmra.mxu0 %v1481
        %v1647 = vpop.f32.mrf.mxu0
        %v1648 = vadd.f32 0.0, %v1647
        %1649 = vmatmul.f32.gmra.mxu0 %v1484
        %v1650 = vpop.f32.mrf.mxu0
        %v1651 = vadd.f32 0.0, %v1650
        %1652 = vmatmul.f32.gmra.mxu0 %v1487
        %v1653 = vpop.f32.mrf.mxu0
        %v1654 = vadd.f32 0.0, %v1653
        %1655 = vmatmul.f32.gmra.mxu0 %v1490
        %v1656 = vpop.f32.mrf.mxu0
        %v1657 = vadd.f32 0.0, %v1656
        %1658 = vmatmul.f32.gmra.mxu0 %v1493
        %v1659 = vpop.f32.mrf.mxu0
        %v1660 = vadd.f32 0.0, %v1659
        %1661 = vmatmul.f32.gmra.mxu0 %v1496
        %v1662 = vpop.f32.mrf.mxu0
        %v1663 = vadd.f32 0.0, %v1662
        %1664 = vmatmul.f32.gmra.mxu0 %v1499
        %v1665 = vpop.f32.mrf.mxu0
        %v1666 = vadd.f32 0.0, %v1665
        %1667 = vmatmul.f32.gmra.mxu0 %v1502
        %v1668 = vpop.f32.mrf.mxu0
        %v1669 = vadd.f32 0.0, %v1668
        %1670 = vmatmul.f32.gmra.mxu0 %v1505
        %v1671 = vpop.f32.mrf.mxu0
        %v1672 = vadd.f32 0.0, %v1671
        %1673 = vmatmul.f32.gmra.mxu0 %v1508
        %v1674 = vpop.f32.mrf.mxu0
        %v1675 = vadd.f32 0.0, %v1674
        %1676 = vmatmul.f32.gmra.mxu0 %v1511
        %v1677 = vpop.f32.mrf.mxu0
        %v1678 = vadd.f32 0.0, %v1677
        %1679 = vmatmul.f32.gmra.mxu0 %v1514
        %v1680 = vpop.f32.mrf.mxu0
        %v1681 = vadd.f32 0.0, %v1680
        %1682 = vmatmul.f32.gmra.mxu0 %v1517
        %v1683 = vpop.f32.mrf.mxu0
        %v1684 = vadd.f32 0.0, %v1683
        %1685 = vmatmul.f32.gmra.mxu0 %v1520
        %v1686 = vpop.f32.mrf.mxu0
        %v1687 = vadd.f32 0.0, %v1686
        %1688 = vmatmul.f32.gmra.mxu0 %v1523
        %v1689 = vpop.f32.mrf.mxu0
        %v1690 = vadd.f32 0.0, %v1689
        %1691 = vmatmul.f32.gmra.mxu0 %v1526
        %v1692 = vpop.f32.mrf.mxu0
        %v1693 = vadd.f32 0.0, %v1692
        %1694 = vmatmul.f32.gmra.mxu0 %v1529
        %v1695 = vpop.f32.mrf.mxu0
        %v1696 = vadd.f32 0.0, %v1695
        %1697 = vmatmul.f32.gmra.mxu0 %v1532
        %v1698 = vpop.f32.mrf.mxu0
        %v1699 = vadd.f32 0.0, %v1698
        %1700 = vmatmul.f32.gmra.mxu0 %v1535
        %v1701 = vpop.f32.mrf.mxu0
        %v1702 = vadd.f32 0.0, %v1701
        %1703 = vmatmul.f32.gmra.mxu0 %v1538
        %v1704 = vpop.f32.mrf.mxu0
        %v1705 = vadd.f32 0.0, %v1704
        %1706 = vmatmul.f32.gmra.mxu0 %v1541
        %v1707 = vpop.f32.mrf.mxu0
        %v1708 = vadd.f32 0.0, %v1707
        %1709 = vmatmul.f32.gmra.mxu0 %v1544
        %v1710 = vpop.f32.mrf.mxu0
        %v1711 = vadd.f32 0.0, %v1710
        %1712 = vmatmul.f32.gmra.mxu0 %v1547
        %v1713 = vpop.f32.mrf.mxu0
        %v1714 = vadd.f32 0.0, %v1713
        %1715 = vmatmul.f32.gmra.mxu0 %v1550
        %v1716 = vpop.f32.mrf.mxu0
        %v1717 = vadd.f32 0.0, %v1716
        %1718 = vmatmul.f32.gmra.mxu0 %v1553
        %v1719 = vpop.f32.mrf.mxu0
        %v1720 = vadd.f32 0.0, %v1719
        %1721 = vmatmul.f32.gmra.mxu0 %v1556
        %v1722 = vpop.f32.mrf.mxu0
        %v1723 = vadd.f32 0.0, %v1722
        %1724 = vmatmul.f32.gmra.mxu0 %v1559
        %v1725 = vpop.f32.mrf.mxu0
        %v1726 = vadd.f32 0.0, %v1725
        %1727 = vmatmul.f32.gmra.mxu0 %v1562
        %v1728 = vpop.f32.mrf.mxu0
        %v1729 = vadd.f32 0.0, %v1728
        %1730 = vmatmul.f32.gmra.mxu0 %v1565
        %v1731 = vpop.f32.mrf.mxu0
        %v1732 = vadd.f32 0.0, %v1731
        %1733 = vmatmul.f32.gmra.mxu0 %v1568
        %v1734 = vpop.f32.mrf.mxu0
        %v1735 = vadd.f32 0.0, %v1734
        %1736 = vmatmul.f32.gmra.mxu0 %v1571
        %v1737 = vpop.f32.mrf.mxu0
        %v1738 = vadd.f32 0.0, %v1737
        %1739 = vmatmul.f32.gmra.mxu0 %v1574
        %v1740 = vpop.f32.mrf.mxu0
        %v1741 = vadd.f32 0.0, %v1740
        %1742 = vmatmul.f32.gmra.mxu0 %v1577
        %v1743 = vpop.f32.mrf.mxu0
        %v1744 = vadd.f32 0.0, %v1743
        %1745 = vmatmul.f32.gmra.mxu0 %v1580
        %v1746 = vpop.f32.mrf.mxu0
        %v1747 = vadd.f32 0.0, %v1746
        %1748 = vdwg.mxu0
        %v1749 = vmax.f32 %v1232, %v1600
        %v1750 = vmax.f32 %v1235, %v1603
        %v1751 = vmax.f32 %v1238, %v1606
        %v1752 = vmax.f32 %v1241, %v1609
        %v1753 = vmax.f32 %v1244, %v1612
        %v1754 = vmax.f32 %v1247, %v1615
        %v1755 = vmax.f32 %v1250, %v1618
        %v1756 = vmax.f32 %v1253, %v1621
        %v1757 = vmax.f32 %v1256, %v1624
        %v1758 = vmax.f32 %v1259, %v1627
        %v1759 = vmax.f32 %v1262, %v1630
        %v1760 = vmax.f32 %v1265, %v1633
        %v1761 = vmax.f32 %v1268, %v1636
        %v1762 = vmax.f32 %v1271, %v1639
        %v1763 = vmax.f32 %v1274, %v1642
        %v1764 = vmax.f32 %v1277, %v1645
        %v1765 = vmax.f32 %v1280, %v1648
        %v1766 = vmax.f32 %v1283, %v1651
        %v1767 = vmax.f32 %v1286, %v1654
        %v1768 = vmax.f32 %v1289, %v1657
        %v1769 = vmax.f32 %v1292, %v1660
        %v1770 = vmax.f32 %v1295, %v1663
        %v1771 = vmax.f32 %v1298, %v1666
        %v1772 = vmax.f32 %v1301, %v1669
        %v1773 = vmax.f32 %v1304, %v1672
        %v1774 = vmax.f32 %v1307, %v1675
        %v1775 = vmax.f32 %v1310, %v1678
        %v1776 = vmax.f32 %v1313, %v1681
        %v1777 = vmax.f32 %v1316, %v1684
        %v1778 = vmax.f32 %v1319, %v1687
        %v1779 = vmax.f32 %v1322, %v1690
        %v1780 = vmax.f32 %v1325, %v1693
        %v1781 = vmax.f32 %v1328, %v1696
        %v1782 = vmax.f32 %v1331, %v1699
        %v1783 = vmax.f32 %v1334, %v1702
        %v1784 = vmax.f32 %v1337, %v1705
        %v1785 = vmax.f32 %v1340, %v1708
        %v1786 = vmax.f32 %v1343, %v1711
        %v1787 = vmax.f32 %v1346, %v1714
        %v1788 = vmax.f32 %v1349, %v1717
        %v1789 = vmax.f32 %v1352, %v1720
        %v1790 = vmax.f32 %v1355, %v1723
        %v1791 = vmax.f32 %v1358, %v1726
        %v1792 = vmax.f32 %v1361, %v1729
        %v1793 = vmax.f32 %v1364, %v1732
        %v1794 = vmax.f32 %v1367, %v1735
        %v1795 = vmax.f32 %v1370, %v1738
        %v1796 = vmax.f32 %v1373, %v1741
        %v1797 = vmax.f32 %v1376, %v1744
        %v1798 = vmax.f32 %v1379, %v1747
        %s1799 = scalar_lea.vmem %s977, 800 [#allocation2]
        %v1800 = vld [vmem:[%s1799] sm:$0xff]
        %v1801 = vld [vmem:[%s1799 + $0x8] sm:$0xff]
        %v1802 = vld [vmem:[%s1799 + $0x10] sm:$0xff]
        %v1803 = vld [vmem:[%s1799 + $0x18] sm:$0xff]
        %v1804 = vld [vmem:[%s1799 + $0x20] sm:$0xff]
        %v1805 = vld [vmem:[%s1799 + $0x28] sm:$0xff]
        %v1806 = vld [vmem:[%s1799 + $0x30] sm:$0xff]
        %v1807 = vld [vmem:[%s1799 + $0x38] sm:$0xff]
        %v1808 = vld [vmem:[%s1799 + $0x40] sm:$0xff]
        %v1809 = vld [vmem:[%s1799 + $0x48] sm:$0xff]
        %v1810 = vld [vmem:[%s1799 + $0x50] sm:$0xff]
        %v1811 = vld [vmem:[%s1799 + $0x58] sm:$0xff]
        %v1812 = vld [vmem:[%s1799 + $0x60] sm:$0xff]
        %v1813 = vld [vmem:[%s1799 + $0x68] sm:$0xff]
        %v1814 = vld [vmem:[%s1799 + $0x70] sm:$0xff]
        %v1815 = vld [vmem:[%s1799 + $0x78] sm:$0xff]
        %v1816 = vld [vmem:[%s1799 + $0x80] sm:$0xff]
        %v1817 = vld [vmem:[%s1799 + $0x88] sm:$0xff]
        %v1818 = vld [vmem:[%s1799 + $0x90] sm:$0xff]
        %v1819 = vld [vmem:[%s1799 + $0x98] sm:$0xff]
        %v1820 = vld [vmem:[%s1799 + $0xa0] sm:$0xff]
        %v1821 = vld [vmem:[%s1799 + $0xa8] sm:$0xff]
        %v1822 = vld [vmem:[%s1799 + $0xb0] sm:$0xff]
        %v1823 = vld [vmem:[%s1799 + $0xb8] sm:$0xff]
        %v1824 = vld [vmem:[%s1799 + $0xc0] sm:$0xff]
        %v1825 = vld [vmem:[%s1799 + $0xc8] sm:$0xff]
        %v1826 = vld [vmem:[%s1799 + $0xd0] sm:$0xff]
        %v1827 = vld [vmem:[%s1799 + $0xd8] sm:$0xff]
        %v1828 = vld [vmem:[%s1799 + $0xe0] sm:$0xff]
        %v1829 = vld [vmem:[%s1799 + $0xe8] sm:$0xff]
        %v1830 = vld [vmem:[%s1799 + $0xf0] sm:$0xff]
        %v1831 = vld [vmem:[%s1799 + $0xf8] sm:$0xff]
        %v1832 = vld [vmem:[%s1799 + $0x100] sm:$0xff]
        %v1833 = vld [vmem:[%s1799 + $0x108] sm:$0xff]
        %v1834 = vld [vmem:[%s1799 + $0x110] sm:$0xff]
        %v1835 = vld [vmem:[%s1799 + $0x118] sm:$0xff]
        %v1836 = vld [vmem:[%s1799 + $0x120] sm:$0xff]
        %v1837 = vld [vmem:[%s1799 + $0x128] sm:$0xff]
        %v1838 = vld [vmem:[%s1799 + $0x130] sm:$0xff]
        %v1839 = vld [vmem:[%s1799 + $0x138] sm:$0xff]
        %v1840 = vld [vmem:[%s1799 + $0x140] sm:$0xff]
        %v1841 = vld [vmem:[%s1799 + $0x148] sm:$0xff]
        %v1842 = vld [vmem:[%s1799 + $0x150] sm:$0xff]
        %v1843 = vld [vmem:[%s1799 + $0x158] sm:$0xff]
        %v1844 = vld [vmem:[%s1799 + $0x160] sm:$0xff]
        %v1845 = vld [vmem:[%s1799 + $0x168] sm:$0xff]
        %v1846 = vld [vmem:[%s1799 + $0x170] sm:$0xff]
        %v1847 = vld [vmem:[%s1799 + $0x178] sm:$0xff]
        %v1848 = vld [vmem:[%s1799 + $0x180] sm:$0xff]
        %v1849 = vld [vmem:[%s1799 + $0x188] sm:$0xff]
        %v1851 = vsel %vm1059, %v1800, 0
        %v1854 = vsel %vm1059, %v1801, 0
        %v1857 = vsel %vm1059, %v1802, 0
        %v1860 = vsel %vm1059, %v1803, 0
        %v1863 = vsel %vm1059, %v1804, 0
        %v1866 = vsel %vm1059, %v1805, 0
        %v1869 = vsel %vm1059, %v1806, 0
        %v1872 = vsel %vm1059, %v1807, 0
        %v1875 = vsel %vm1059, %v1808, 0
        %v1878 = vsel %vm1059, %v1809, 0
        %v1881 = vsel %vm1059, %v1810, 0
        %v1884 = vsel %vm1059, %v1811, 0
        %v1887 = vsel %vm1059, %v1812, 0
        %v1890 = vsel %vm1059, %v1813, 0
        %v1893 = vsel %vm1059, %v1814, 0
        %v1896 = vsel %vm1059, %v1815, 0
        %v1899 = vsel %vm1059, %v1816, 0
        %v1902 = vsel %vm1059, %v1817, 0
        %v1905 = vsel %vm1059, %v1818, 0
        %v1908 = vsel %vm1059, %v1819, 0
        %v1911 = vsel %vm1059, %v1820, 0
        %v1914 = vsel %vm1059, %v1821, 0
        %v1917 = vsel %vm1059, %v1822, 0
        %v1920 = vsel %vm1059, %v1823, 0
        %v1923 = vsel %vm1059, %v1824, 0
        %v1926 = vsel %vm1059, %v1825, 0
        %v1929 = vsel %vm1059, %v1826, 0
        %v1932 = vsel %vm1059, %v1827, 0
        %v1935 = vsel %vm1059, %v1828, 0
        %v1938 = vsel %vm1059, %v1829, 0
        %v1941 = vsel %vm1059, %v1830, 0
        %v1944 = vsel %vm1059, %v1831, 0
        %v1947 = vsel %vm1059, %v1832, 0
        %v1950 = vsel %vm1059, %v1833, 0
        %v1953 = vsel %vm1059, %v1834, 0
        %v1956 = vsel %vm1059, %v1835, 0
        %v1959 = vsel %vm1059, %v1836, 0
        %v1962 = vsel %vm1059, %v1837, 0
        %v1965 = vsel %vm1059, %v1838, 0
        %v1968 = vsel %vm1059, %v1839, 0
        %v1971 = vsel %vm1059, %v1840, 0
        %v1974 = vsel %vm1059, %v1841, 0
        %v1977 = vsel %vm1059, %v1842, 0
        %v1980 = vsel %vm1059, %v1843, 0
        %v1983 = vsel %vm1059, %v1844, 0
        %v1986 = vsel %vm1059, %v1845, 0
        %v1989 = vsel %vm1059, %v1846, 0
        %v1992 = vsel %vm1059, %v1847, 0
        %v1995 = vsel %vm1059, %v1848, 0
        %v1998 = vsel %vm1059, %v1849, 0
        %2000 = vmatpush.msra.mxu0 0.0
        %2001 = vmatpush.msra.mxu0 0.0
        %2002 = vmatpush.msra.mxu0 0.0
        %2003 = vmatpush.msra.mxu0 0.0
        %2004 = vmatpush.msra.mxu0 0.0
        %2005 = vmatpush.msra.mxu0 0.0
        %2006 = vmatpush.msra.mxu0 0.0
        %2007 = vmatpush.msra.mxu0 0.0
        %2008 = vmatpush.msra.mxu0 0.0
        %2009 = vmatpush.msra.mxu0 0.0
        %2010 = vmatpush.msra.mxu0 0.0
        %2011 = vmatpush.msra.mxu0 0.0
        %2012 = vmatpush.msra.mxu0 %v1212
        %2013 = vmatpush.msra.mxu0 %v1007
        %2014 = vmatpush.msra.mxu0 %v1006
        %2015 = vmatpush.msra.mxu0 %v1005
        %2016 = vmatmul.f32.gmra.mxu0 %v1851
        %v2017 = vpop.f32.mrf.mxu0
        %v2018 = vadd.f32 0.0, %v2017
        %2019 = vmatmul.f32.gmra.mxu0 %v1854
        %v2020 = vpop.f32.mrf.mxu0
        %v2021 = vadd.f32 0.0, %v2020
        %2022 = vmatmul.f32.gmra.mxu0 %v1857
        %v2023 = vpop.f32.mrf.mxu0
        %v2024 = vadd.f32 0.0, %v2023
        %2025 = vmatmul.f32.gmra.mxu0 %v1860
        %v2026 = vpop.f32.mrf.mxu0
        %v2027 = vadd.f32 0.0, %v2026
        %2028 = vmatmul.f32.gmra.mxu0 %v1863
        %v2029 = vpop.f32.mrf.mxu0
        %v2030 = vadd.f32 0.0, %v2029
        %2031 = vmatmul.f32.gmra.mxu0 %v1866
        %v2032 = vpop.f32.mrf.mxu0
        %v2033 = vadd.f32 0.0, %v2032
        %2034 = vmatmul.f32.gmra.mxu0 %v1869
        %v2035 = vpop.f32.mrf.mxu0
        %v2036 = vadd.f32 0.0, %v2035
        %2037 = vmatmul.f32.gmra.mxu0 %v1872
        %v2038 = vpop.f32.mrf.mxu0
        %v2039 = vadd.f32 0.0, %v2038
        %2040 = vmatmul.f32.gmra.mxu0 %v1875
        %v2041 = vpop.f32.mrf.mxu0
        %v2042 = vadd.f32 0.0, %v2041
        %2043 = vmatmul.f32.gmra.mxu0 %v1878
        %v2044 = vpop.f32.mrf.mxu0
        %v2045 = vadd.f32 0.0, %v2044
        %2046 = vmatmul.f32.gmra.mxu0 %v1881
        %v2047 = vpop.f32.mrf.mxu0
        %v2048 = vadd.f32 0.0, %v2047
        %2049 = vmatmul.f32.gmra.mxu0 %v1884
        %v2050 = vpop.f32.mrf.mxu0
        %v2051 = vadd.f32 0.0, %v2050
        %2052 = vmatmul.f32.gmra.mxu0 %v1887
        %v2053 = vpop.f32.mrf.mxu0
        %v2054 = vadd.f32 0.0, %v2053
        %2055 = vmatmul.f32.gmra.mxu0 %v1890
        %v2056 = vpop.f32.mrf.mxu0
        %v2057 = vadd.f32 0.0, %v2056
        %2058 = vmatmul.f32.gmra.mxu0 %v1893
        %v2059 = vpop.f32.mrf.mxu0
        %v2060 = vadd.f32 0.0, %v2059
        %2061 = vmatmul.f32.gmra.mxu0 %v1896
        %v2062 = vpop.f32.mrf.mxu0
        %v2063 = vadd.f32 0.0, %v2062
        %2064 = vmatmul.f32.gmra.mxu0 %v1899
        %v2065 = vpop.f32.mrf.mxu0
        %v2066 = vadd.f32 0.0, %v2065
        %2067 = vmatmul.f32.gmra.mxu0 %v1902
        %v2068 = vpop.f32.mrf.mxu0
        %v2069 = vadd.f32 0.0, %v2068
        %2070 = vmatmul.f32.gmra.mxu0 %v1905
        %v2071 = vpop.f32.mrf.mxu0
        %v2072 = vadd.f32 0.0, %v2071
        %2073 = vmatmul.f32.gmra.mxu0 %v1908
        %v2074 = vpop.f32.mrf.mxu0
        %v2075 = vadd.f32 0.0, %v2074
        %2076 = vmatmul.f32.gmra.mxu0 %v1911
        %v2077 = vpop.f32.mrf.mxu0
        %v2078 = vadd.f32 0.0, %v2077
        %2079 = vmatmul.f32.gmra.mxu0 %v1914
        %v2080 = vpop.f32.mrf.mxu0
        %v2081 = vadd.f32 0.0, %v2080
        %2082 = vmatmul.f32.gmra.mxu0 %v1917
        %v2083 = vpop.f32.mrf.mxu0
        %v2084 = vadd.f32 0.0, %v2083
        %2085 = vmatmul.f32.gmra.mxu0 %v1920
        %v2086 = vpop.f32.mrf.mxu0
        %v2087 = vadd.f32 0.0, %v2086
        %2088 = vmatmul.f32.gmra.mxu0 %v1923
        %v2089 = vpop.f32.mrf.mxu0
        %v2090 = vadd.f32 0.0, %v2089
        %2091 = vmatmul.f32.gmra.mxu0 %v1926
        %v2092 = vpop.f32.mrf.mxu0
        %v2093 = vadd.f32 0.0, %v2092
        %2094 = vmatmul.f32.gmra.mxu0 %v1929
        %v2095 = vpop.f32.mrf.mxu0
        %v2096 = vadd.f32 0.0, %v2095
        %2097 = vmatmul.f32.gmra.mxu0 %v1932
        %v2098 = vpop.f32.mrf.mxu0
        %v2099 = vadd.f32 0.0, %v2098
        %2100 = vmatmul.f32.gmra.mxu0 %v1935
        %v2101 = vpop.f32.mrf.mxu0
        %v2102 = vadd.f32 0.0, %v2101
        %2103 = vmatmul.f32.gmra.mxu0 %v1938
        %v2104 = vpop.f32.mrf.mxu0
        %v2105 = vadd.f32 0.0, %v2104
        %2106 = vmatmul.f32.gmra.mxu0 %v1941
        %v2107 = vpop.f32.mrf.mxu0
        %v2108 = vadd.f32 0.0, %v2107
        %2109 = vmatmul.f32.gmra.mxu0 %v1944
        %v2110 = vpop.f32.mrf.mxu0
        %v2111 = vadd.f32 0.0, %v2110
        %2112 = vmatmul.f32.gmra.mxu0 %v1947
        %v2113 = vpop.f32.mrf.mxu0
        %v2114 = vadd.f32 0.0, %v2113
        %2115 = vmatmul.f32.gmra.mxu0 %v1950
        %v2116 = vpop.f32.mrf.mxu0
        %v2117 = vadd.f32 0.0, %v2116
        %2118 = vmatmul.f32.gmra.mxu0 %v1953
        %v2119 = vpop.f32.mrf.mxu0
        %v2120 = vadd.f32 0.0, %v2119
        %2121 = vmatmul.f32.gmra.mxu0 %v1956
        %v2122 = vpop.f32.mrf.mxu0
        %v2123 = vadd.f32 0.0, %v2122
        %2124 = vmatmul.f32.gmra.mxu0 %v1959
        %v2125 = vpop.f32.mrf.mxu0
        %v2126 = vadd.f32 0.0, %v2125
        %2127 = vmatmul.f32.gmra.mxu0 %v1962
        %v2128 = vpop.f32.mrf.mxu0
        %v2129 = vadd.f32 0.0, %v2128
        %2130 = vmatmul.f32.gmra.mxu0 %v1965
        %v2131 = vpop.f32.mrf.mxu0
        %v2132 = vadd.f32 0.0, %v2131
        %2133 = vmatmul.f32.gmra.mxu0 %v1968
        %v2134 = vpop.f32.mrf.mxu0
        %v2135 = vadd.f32 0.0, %v2134
        %2136 = vmatmul.f32.gmra.mxu0 %v1971
        %v2137 = vpop.f32.mrf.mxu0
        %v2138 = vadd.f32 0.0, %v2137
        %2139 = vmatmul.f32.gmra.mxu0 %v1974
        %v2140 = vpop.f32.mrf.mxu0
        %v2141 = vadd.f32 0.0, %v2140
        %2142 = vmatmul.f32.gmra.mxu0 %v1977
        %v2143 = vpop.f32.mrf.mxu0
        %v2144 = vadd.f32 0.0, %v2143
        %2145 = vmatmul.f32.gmra.mxu0 %v1980
        %v2146 = vpop.f32.mrf.mxu0
        %v2147 = vadd.f32 0.0, %v2146
        %2148 = vmatmul.f32.gmra.mxu0 %v1983
        %v2149 = vpop.f32.mrf.mxu0
        %v2150 = vadd.f32 0.0, %v2149
        %2151 = vmatmul.f32.gmra.mxu0 %v1986
        %v2152 = vpop.f32.mrf.mxu0
        %v2153 = vadd.f32 0.0, %v2152
        %2154 = vmatmul.f32.gmra.mxu0 %v1989
        %v2155 = vpop.f32.mrf.mxu0
        %v2156 = vadd.f32 0.0, %v2155
        %2157 = vmatmul.f32.gmra.mxu0 %v1992
        %v2158 = vpop.f32.mrf.mxu0
        %v2159 = vadd.f32 0.0, %v2158
        %2160 = vmatmul.f32.gmra.mxu0 %v1995
        %v2161 = vpop.f32.mrf.mxu0
        %v2162 = vadd.f32 0.0, %v2161
        %2163 = vmatmul.f32.gmra.mxu0 %v1998
        %v2164 = vpop.f32.mrf.mxu0
        %v2165 = vadd.f32 0.0, %v2164
        %2166 = vdwg.mxu0
        %s2167 = scalar_lea.vmem %s977, 1200 [#allocation2]
        %v2168 = vld [vmem:[%s2167] sm:$0xff]
        %v2169 = vld [vmem:[%s2167 + $0x8] sm:$0xff]
        %v2170 = vld [vmem:[%s2167 + $0x10] sm:$0xff]
        %v2171 = vld [vmem:[%s2167 + $0x18] sm:$0xff]
        %v2172 = vld [vmem:[%s2167 + $0x20] sm:$0xff]
        %v2173 = vld [vmem:[%s2167 + $0x28] sm:$0xff]
        %v2174 = vld [vmem:[%s2167 + $0x30] sm:$0xff]
        %v2175 = vld [vmem:[%s2167 + $0x38] sm:$0xff]
        %v2176 = vld [vmem:[%s2167 + $0x40] sm:$0xff]
        %v2177 = vld [vmem:[%s2167 + $0x48] sm:$0xff]
        %v2178 = vld [vmem:[%s2167 + $0x50] sm:$0xff]
        %v2179 = vld [vmem:[%s2167 + $0x58] sm:$0xff]
        %v2180 = vld [vmem:[%s2167 + $0x60] sm:$0xff]
        %v2181 = vld [vmem:[%s2167 + $0x68] sm:$0xff]
        %v2182 = vld [vmem:[%s2167 + $0x70] sm:$0xff]
        %v2183 = vld [vmem:[%s2167 + $0x78] sm:$0xff]
        %v2184 = vld [vmem:[%s2167 + $0x80] sm:$0xff]
        %v2185 = vld [vmem:[%s2167 + $0x88] sm:$0xff]
        %v2186 = vld [vmem:[%s2167 + $0x90] sm:$0xff]
        %v2187 = vld [vmem:[%s2167 + $0x98] sm:$0xff]
        %v2188 = vld [vmem:[%s2167 + $0xa0] sm:$0xff]
        %v2189 = vld [vmem:[%s2167 + $0xa8] sm:$0xff]
        %v2190 = vld [vmem:[%s2167 + $0xb0] sm:$0xff]
        %v2191 = vld [vmem:[%s2167 + $0xb8] sm:$0xff]
        %v2192 = vld [vmem:[%s2167 + $0xc0] sm:$0xff]
        %v2193 = vld [vmem:[%s2167 + $0xc8] sm:$0xff]
        %v2194 = vld [vmem:[%s2167 + $0xd0] sm:$0xff]
        %v2195 = vld [vmem:[%s2167 + $0xd8] sm:$0xff]
        %v2196 = vld [vmem:[%s2167 + $0xe0] sm:$0xff]
        %v2197 = vld [vmem:[%s2167 + $0xe8] sm:$0xff]
        %v2198 = vld [vmem:[%s2167 + $0xf0] sm:$0xff]
        %v2199 = vld [vmem:[%s2167 + $0xf8] sm:$0xff]
        %v2200 = vld [vmem:[%s2167 + $0x100] sm:$0xff]
        %v2201 = vld [vmem:[%s2167 + $0x108] sm:$0xff]
        %v2202 = vld [vmem:[%s2167 + $0x110] sm:$0xff]
        %v2203 = vld [vmem:[%s2167 + $0x118] sm:$0xff]
        %v2204 = vld [vmem:[%s2167 + $0x120] sm:$0xff]
        %v2205 = vld [vmem:[%s2167 + $0x128] sm:$0xff]
        %v2206 = vld [vmem:[%s2167 + $0x130] sm:$0xff]
        %v2207 = vld [vmem:[%s2167 + $0x138] sm:$0xff]
        %v2208 = vld [vmem:[%s2167 + $0x140] sm:$0xff]
        %v2209 = vld [vmem:[%s2167 + $0x148] sm:$0xff]
        %v2210 = vld [vmem:[%s2167 + $0x150] sm:$0xff]
        %v2211 = vld [vmem:[%s2167 + $0x158] sm:$0xff]
        %v2212 = vld [vmem:[%s2167 + $0x160] sm:$0xff]
        %v2213 = vld [vmem:[%s2167 + $0x168] sm:$0xff]
        %v2214 = vld [vmem:[%s2167 + $0x170] sm:$0xff]
        %v2215 = vld [vmem:[%s2167 + $0x178] sm:$0xff]
        %v2216 = vld [vmem:[%s2167 + $0x180] sm:$0xff]
        %v2217 = vld [vmem:[%s2167 + $0x188] sm:$0xff]
        %v2219 = vsel %vm1059, %v2168, 0
        %v2222 = vsel %vm1059, %v2169, 0
        %v2225 = vsel %vm1059, %v2170, 0
        %v2228 = vsel %vm1059, %v2171, 0
        %v2231 = vsel %vm1059, %v2172, 0
        %v2234 = vsel %vm1059, %v2173, 0
        %v2237 = vsel %vm1059, %v2174, 0
        %v2240 = vsel %vm1059, %v2175, 0
        %v2243 = vsel %vm1059, %v2176, 0
        %v2246 = vsel %vm1059, %v2177, 0
        %v2249 = vsel %vm1059, %v2178, 0
        %v2252 = vsel %vm1059, %v2179, 0
        %v2255 = vsel %vm1059, %v2180, 0
        %v2258 = vsel %vm1059, %v2181, 0
        %v2261 = vsel %vm1059, %v2182, 0
        %v2264 = vsel %vm1059, %v2183, 0
        %v2267 = vsel %vm1059, %v2184, 0
        %v2270 = vsel %vm1059, %v2185, 0
        %v2273 = vsel %vm1059, %v2186, 0
        %v2276 = vsel %vm1059, %v2187, 0
        %v2279 = vsel %vm1059, %v2188, 0
        %v2282 = vsel %vm1059, %v2189, 0
        %v2285 = vsel %vm1059, %v2190, 0
        %v2288 = vsel %vm1059, %v2191, 0
        %v2291 = vsel %vm1059, %v2192, 0
        %v2294 = vsel %vm1059, %v2193, 0
        %v2297 = vsel %vm1059, %v2194, 0
        %v2300 = vsel %vm1059, %v2195, 0
        %v2303 = vsel %vm1059, %v2196, 0
        %v2306 = vsel %vm1059, %v2197, 0
        %v2309 = vsel %vm1059, %v2198, 0
        %v2312 = vsel %vm1059, %v2199, 0
        %v2315 = vsel %vm1059, %v2200, 0
        %v2318 = vsel %vm1059, %v2201, 0
        %v2321 = vsel %vm1059, %v2202, 0
        %v2324 = vsel %vm1059, %v2203, 0
        %v2327 = vsel %vm1059, %v2204, 0
        %v2330 = vsel %vm1059, %v2205, 0
        %v2333 = vsel %vm1059, %v2206, 0
        %v2336 = vsel %vm1059, %v2207, 0
        %v2339 = vsel %vm1059, %v2208, 0
        %v2342 = vsel %vm1059, %v2209, 0
        %v2345 = vsel %vm1059, %v2210, 0
        %v2348 = vsel %vm1059, %v2211, 0
        %v2351 = vsel %vm1059, %v2212, 0
        %v2354 = vsel %vm1059, %v2213, 0
        %v2357 = vsel %vm1059, %v2214, 0
        %v2360 = vsel %vm1059, %v2215, 0
        %v2363 = vsel %vm1059, %v2216, 0
        %v2366 = vsel %vm1059, %v2217, 0
        %2368 = vmatpush.msra.mxu0 0.0
        %2369 = vmatpush.msra.mxu0 0.0
        %2370 = vmatpush.msra.mxu0 0.0
        %2371 = vmatpush.msra.mxu0 0.0
        %2372 = vmatpush.msra.mxu0 0.0
        %2373 = vmatpush.msra.mxu0 0.0
        %2374 = vmatpush.msra.mxu0 0.0
        %2375 = vmatpush.msra.mxu0 0.0
        %2376 = vmatpush.msra.mxu0 0.0
        %2377 = vmatpush.msra.mxu0 0.0
        %2378 = vmatpush.msra.mxu0 0.0
        %2379 = vmatpush.msra.mxu0 0.0
        %2380 = vmatpush.msra.mxu0 %v1212
        %2381 = vmatpush.msra.mxu0 %v1007
        %2382 = vmatpush.msra.mxu0 %v1006
        %2383 = vmatpush.msra.mxu0 %v1005
        %2384 = vmatmul.f32.gmra.mxu0 %v2219
        %v2385 = vpop.f32.mrf.mxu0
        %v2386 = vadd.f32 0.0, %v2385
        %2387 = vmatmul.f32.gmra.mxu0 %v2222
        %v2388 = vpop.f32.mrf.mxu0
        %v2389 = vadd.f32 0.0, %v2388
        %2390 = vmatmul.f32.gmra.mxu0 %v2225
        %v2391 = vpop.f32.mrf.mxu0
        %v2392 = vadd.f32 0.0, %v2391
        %2393 = vmatmul.f32.gmra.mxu0 %v2228
        %v2394 = vpop.f32.mrf.mxu0
        %v2395 = vadd.f32 0.0, %v2394
        %2396 = vmatmul.f32.gmra.mxu0 %v2231
        %v2397 = vpop.f32.mrf.mxu0
        %v2398 = vadd.f32 0.0, %v2397
        %2399 = vmatmul.f32.gmra.mxu0 %v2234
        %v2400 = vpop.f32.mrf.mxu0
        %v2401 = vadd.f32 0.0, %v2400
        %2402 = vmatmul.f32.gmra.mxu0 %v2237
        %v2403 = vpop.f32.mrf.mxu0
        %v2404 = vadd.f32 0.0, %v2403
        %2405 = vmatmul.f32.gmra.mxu0 %v2240
        %v2406 = vpop.f32.mrf.mxu0
        %v2407 = vadd.f32 0.0, %v2406
        %2408 = vmatmul.f32.gmra.mxu0 %v2243
        %v2409 = vpop.f32.mrf.mxu0
        %v2410 = vadd.f32 0.0, %v2409
        %2411 = vmatmul.f32.gmra.mxu0 %v2246
        %v2412 = vpop.f32.mrf.mxu0
        %v2413 = vadd.f32 0.0, %v2412
        %2414 = vmatmul.f32.gmra.mxu0 %v2249
        %v2415 = vpop.f32.mrf.mxu0
        %v2416 = vadd.f32 0.0, %v2415
        %2417 = vmatmul.f32.gmra.mxu0 %v2252
        %v2418 = vpop.f32.mrf.mxu0
        %v2419 = vadd.f32 0.0, %v2418
        %2420 = vmatmul.f32.gmra.mxu0 %v2255
        %v2421 = vpop.f32.mrf.mxu0
        %v2422 = vadd.f32 0.0, %v2421
        %2423 = vmatmul.f32.gmra.mxu0 %v2258
        %v2424 = vpop.f32.mrf.mxu0
        %v2425 = vadd.f32 0.0, %v2424
        %2426 = vmatmul.f32.gmra.mxu0 %v2261
        %v2427 = vpop.f32.mrf.mxu0
        %v2428 = vadd.f32 0.0, %v2427
        %2429 = vmatmul.f32.gmra.mxu0 %v2264
        %v2430 = vpop.f32.mrf.mxu0
        %v2431 = vadd.f32 0.0, %v2430
        %2432 = vmatmul.f32.gmra.mxu0 %v2267
        %v2433 = vpop.f32.mrf.mxu0
        %v2434 = vadd.f32 0.0, %v2433
        %2435 = vmatmul.f32.gmra.mxu0 %v2270
        %v2436 = vpop.f32.mrf.mxu0
        %v2437 = vadd.f32 0.0, %v2436
        %2438 = vmatmul.f32.gmra.mxu0 %v2273
        %v2439 = vpop.f32.mrf.mxu0
        %v2440 = vadd.f32 0.0, %v2439
        %2441 = vmatmul.f32.gmra.mxu0 %v2276
        %v2442 = vpop.f32.mrf.mxu0
        %v2443 = vadd.f32 0.0, %v2442
        %2444 = vmatmul.f32.gmra.mxu0 %v2279
        %v2445 = vpop.f32.mrf.mxu0
        %v2446 = vadd.f32 0.0, %v2445
        %2447 = vmatmul.f32.gmra.mxu0 %v2282
        %v2448 = vpop.f32.mrf.mxu0
        %v2449 = vadd.f32 0.0, %v2448
        %2450 = vmatmul.f32.gmra.mxu0 %v2285
        %v2451 = vpop.f32.mrf.mxu0
        %v2452 = vadd.f32 0.0, %v2451
        %2453 = vmatmul.f32.gmra.mxu0 %v2288
        %v2454 = vpop.f32.mrf.mxu0
        %v2455 = vadd.f32 0.0, %v2454
        %2456 = vmatmul.f32.gmra.mxu0 %v2291
        %v2457 = vpop.f32.mrf.mxu0
        %v2458 = vadd.f32 0.0, %v2457
        %2459 = vmatmul.f32.gmra.mxu0 %v2294
        %v2460 = vpop.f32.mrf.mxu0
        %v2461 = vadd.f32 0.0, %v2460
        %2462 = vmatmul.f32.gmra.mxu0 %v2297
        %v2463 = vpop.f32.mrf.mxu0
        %v2464 = vadd.f32 0.0, %v2463
        %2465 = vmatmul.f32.gmra.mxu0 %v2300
        %v2466 = vpop.f32.mrf.mxu0
        %v2467 = vadd.f32 0.0, %v2466
        %2468 = vmatmul.f32.gmra.mxu0 %v2303
        %v2469 = vpop.f32.mrf.mxu0
        %v2470 = vadd.f32 0.0, %v2469
        %2471 = vmatmul.f32.gmra.mxu0 %v2306
        %v2472 = vpop.f32.mrf.mxu0
        %v2473 = vadd.f32 0.0, %v2472
        %2474 = vmatmul.f32.gmra.mxu0 %v2309
        %v2475 = vpop.f32.mrf.mxu0
        %v2476 = vadd.f32 0.0, %v2475
        %2477 = vmatmul.f32.gmra.mxu0 %v2312
        %v2478 = vpop.f32.mrf.mxu0
        %v2479 = vadd.f32 0.0, %v2478
        %2480 = vmatmul.f32.gmra.mxu0 %v2315
        %v2481 = vpop.f32.mrf.mxu0
        %v2482 = vadd.f32 0.0, %v2481
        %2483 = vmatmul.f32.gmra.mxu0 %v2318
        %v2484 = vpop.f32.mrf.mxu0
        %v2485 = vadd.f32 0.0, %v2484
        %2486 = vmatmul.f32.gmra.mxu0 %v2321
        %v2487 = vpop.f32.mrf.mxu0
        %v2488 = vadd.f32 0.0, %v2487
        %2489 = vmatmul.f32.gmra.mxu0 %v2324
        %v2490 = vpop.f32.mrf.mxu0
        %v2491 = vadd.f32 0.0, %v2490
        %2492 = vmatmul.f32.gmra.mxu0 %v2327
        %v2493 = vpop.f32.mrf.mxu0
        %v2494 = vadd.f32 0.0, %v2493
        %2495 = vmatmul.f32.gmra.mxu0 %v2330
        %v2496 = vpop.f32.mrf.mxu0
        %v2497 = vadd.f32 0.0, %v2496
        %2498 = vmatmul.f32.gmra.mxu0 %v2333
        %v2499 = vpop.f32.mrf.mxu0
        %v2500 = vadd.f32 0.0, %v2499
        %2501 = vmatmul.f32.gmra.mxu0 %v2336
        %v2502 = vpop.f32.mrf.mxu0
        %v2503 = vadd.f32 0.0, %v2502
        %2504 = vmatmul.f32.gmra.mxu0 %v2339
        %v2505 = vpop.f32.mrf.mxu0
        %v2506 = vadd.f32 0.0, %v2505
        %2507 = vmatmul.f32.gmra.mxu0 %v2342
        %v2508 = vpop.f32.mrf.mxu0
        %v2509 = vadd.f32 0.0, %v2508
        %2510 = vmatmul.f32.gmra.mxu0 %v2345
        %v2511 = vpop.f32.mrf.mxu0
        %v2512 = vadd.f32 0.0, %v2511
        %2513 = vmatmul.f32.gmra.mxu0 %v2348
        %v2514 = vpop.f32.mrf.mxu0
        %v2515 = vadd.f32 0.0, %v2514
        %2516 = vmatmul.f32.gmra.mxu0 %v2351
        %v2517 = vpop.f32.mrf.mxu0
        %v2518 = vadd.f32 0.0, %v2517
        %2519 = vmatmul.f32.gmra.mxu0 %v2354
        %v2520 = vpop.f32.mrf.mxu0
        %v2521 = vadd.f32 0.0, %v2520
        %2522 = vmatmul.f32.gmra.mxu0 %v2357
        %v2523 = vpop.f32.mrf.mxu0
        %v2524 = vadd.f32 0.0, %v2523
        %2525 = vmatmul.f32.gmra.mxu0 %v2360
        %v2526 = vpop.f32.mrf.mxu0
        %v2527 = vadd.f32 0.0, %v2526
        %2528 = vmatmul.f32.gmra.mxu0 %v2363
        %v2529 = vpop.f32.mrf.mxu0
        %v2530 = vadd.f32 0.0, %v2529
        %2531 = vmatmul.f32.gmra.mxu0 %v2366
        %v2532 = vpop.f32.mrf.mxu0
        %v2533 = vadd.f32 0.0, %v2532
        %2534 = vdwg.mxu0
        %v2535 = vmax.f32 %v2018, %v2386
        %v2536 = vmax.f32 %v2021, %v2389
        %v2537 = vmax.f32 %v2024, %v2392
        %v2538 = vmax.f32 %v2027, %v2395
        %v2539 = vmax.f32 %v2030, %v2398
        %v2540 = vmax.f32 %v2033, %v2401
        %v2541 = vmax.f32 %v2036, %v2404
        %v2542 = vmax.f32 %v2039, %v2407
        %v2543 = vmax.f32 %v2042, %v2410
        %v2544 = vmax.f32 %v2045, %v2413
        %v2545 = vmax.f32 %v2048, %v2416
        %v2546 = vmax.f32 %v2051, %v2419
        %v2547 = vmax.f32 %v2054, %v2422
        %v2548 = vmax.f32 %v2057, %v2425
        %v2549 = vmax.f32 %v2060, %v2428
        %v2550 = vmax.f32 %v2063, %v2431
        %v2551 = vmax.f32 %v2066, %v2434
        %v2552 = vmax.f32 %v2069, %v2437
        %v2553 = vmax.f32 %v2072, %v2440
        %v2554 = vmax.f32 %v2075, %v2443
        %v2555 = vmax.f32 %v2078, %v2446
        %v2556 = vmax.f32 %v2081, %v2449
        %v2557 = vmax.f32 %v2084, %v2452
        %v2558 = vmax.f32 %v2087, %v2455
        %v2559 = vmax.f32 %v2090, %v2458
        %v2560 = vmax.f32 %v2093, %v2461
        %v2561 = vmax.f32 %v2096, %v2464
        %v2562 = vmax.f32 %v2099, %v2467
        %v2563 = vmax.f32 %v2102, %v2470
        %v2564 = vmax.f32 %v2105, %v2473
        %v2565 = vmax.f32 %v2108, %v2476
        %v2566 = vmax.f32 %v2111, %v2479
        %v2567 = vmax.f32 %v2114, %v2482
        %v2568 = vmax.f32 %v2117, %v2485
        %v2569 = vmax.f32 %v2120, %v2488
        %v2570 = vmax.f32 %v2123, %v2491
        %v2571 = vmax.f32 %v2126, %v2494
        %v2572 = vmax.f32 %v2129, %v2497
        %v2573 = vmax.f32 %v2132, %v2500
        %v2574 = vmax.f32 %v2135, %v2503
        %v2575 = vmax.f32 %v2138, %v2506
        %v2576 = vmax.f32 %v2141, %v2509
        %v2577 = vmax.f32 %v2144, %v2512
        %v2578 = vmax.f32 %v2147, %v2515
        %v2579 = vmax.f32 %v2150, %v2518
        %v2580 = vmax.f32 %v2153, %v2521
        %v2581 = vmax.f32 %v2156, %v2524
        %v2582 = vmax.f32 %v2159, %v2527
        %v2583 = vmax.f32 %v2162, %v2530
        %v2584 = vmax.f32 %v2165, %v2533
        %v2585 = vmax.f32 %v1749, %v2535
        %v2586 = vmax.f32 %v1750, %v2536
        %v2587 = vmax.f32 %v1751, %v2537
        %v2588 = vmax.f32 %v1752, %v2538
        %v2589 = vmax.f32 %v1753, %v2539
        %v2590 = vmax.f32 %v1754, %v2540
        %v2591 = vmax.f32 %v1755, %v2541
        %v2592 = vmax.f32 %v1756, %v2542
        %v2593 = vmax.f32 %v1757, %v2543
        %v2594 = vmax.f32 %v1758, %v2544
        %v2595 = vmax.f32 %v1759, %v2545
        %v2596 = vmax.f32 %v1760, %v2546
        %v2597 = vmax.f32 %v1761, %v2547
        %v2598 = vmax.f32 %v1762, %v2548
        %v2599 = vmax.f32 %v1763, %v2549
        %v2600 = vmax.f32 %v1764, %v2550
        %v2601 = vmax.f32 %v1765, %v2551
        %v2602 = vmax.f32 %v1766, %v2552
        %v2603 = vmax.f32 %v1767, %v2553
        %v2604 = vmax.f32 %v1768, %v2554
        %v2605 = vmax.f32 %v1769, %v2555
        %v2606 = vmax.f32 %v1770, %v2556
        %v2607 = vmax.f32 %v1771, %v2557
        %v2608 = vmax.f32 %v1772, %v2558
        %v2609 = vmax.f32 %v1773, %v2559
        %v2610 = vmax.f32 %v1774, %v2560
        %v2611 = vmax.f32 %v1775, %v2561
        %v2612 = vmax.f32 %v1776, %v2562
        %v2613 = vmax.f32 %v1777, %v2563
        %v2614 = vmax.f32 %v1778, %v2564
        %v2615 = vmax.f32 %v1779, %v2565
        %v2616 = vmax.f32 %v1780, %v2566
        %v2617 = vmax.f32 %v1781, %v2567
        %v2618 = vmax.f32 %v1782, %v2568
        %v2619 = vmax.f32 %v1783, %v2569
        %v2620 = vmax.f32 %v1784, %v2570
        %v2621 = vmax.f32 %v1785, %v2571
        %v2622 = vmax.f32 %v1786, %v2572
        %v2623 = vmax.f32 %v1787, %v2573
        %v2624 = vmax.f32 %v1788, %v2574
        %v2625 = vmax.f32 %v1789, %v2575
        %v2626 = vmax.f32 %v1790, %v2576
        %v2627 = vmax.f32 %v1791, %v2577
        %v2628 = vmax.f32 %v1792, %v2578
        %v2629 = vmax.f32 %v1793, %v2579
        %v2630 = vmax.f32 %v1794, %v2580
        %v2631 = vmax.f32 %v1795, %v2581
        %v2632 = vmax.f32 %v1796, %v2582
        %v2633 = vmax.f32 %v1797, %v2583
        %v2634 = vmax.f32 %v1798, %v2584
        %v2635 = vld [vmem:[%s2] sm:$0x1]
        %v2637 = vperm.slane %v2635, 0
        %v2639 = vadd.f32 %v2585, %v2637
        %v2640 = vadd.f32 %v2586, %v2637
        %v2641 = vadd.f32 %v2587, %v2637
        %v2642 = vadd.f32 %v2588, %v2637
        %v2643 = vadd.f32 %v2589, %v2637
        %v2644 = vadd.f32 %v2590, %v2637
        %v2645 = vadd.f32 %v2591, %v2637
        %v2646 = vadd.f32 %v2592, %v2637
        %v2647 = vadd.f32 %v2593, %v2637
        %v2648 = vadd.f32 %v2594, %v2637
        %v2649 = vadd.f32 %v2595, %v2637
        %v2650 = vadd.f32 %v2596, %v2637
        %v2651 = vadd.f32 %v2597, %v2637
        %v2652 = vadd.f32 %v2598, %v2637
        %v2653 = vadd.f32 %v2599, %v2637
        %v2654 = vadd.f32 %v2600, %v2637
        %v2655 = vadd.f32 %v2601, %v2637
        %v2656 = vadd.f32 %v2602, %v2637
        %v2657 = vadd.f32 %v2603, %v2637
        %v2658 = vadd.f32 %v2604, %v2637
        %v2659 = vadd.f32 %v2605, %v2637
        %v2660 = vadd.f32 %v2606, %v2637
        %v2661 = vadd.f32 %v2607, %v2637
        %v2662 = vadd.f32 %v2608, %v2637
        %v2663 = vadd.f32 %v2609, %v2637
        %v2664 = vadd.f32 %v2610, %v2637
        %v2665 = vadd.f32 %v2611, %v2637
        %v2666 = vadd.f32 %v2612, %v2637
        %v2667 = vadd.f32 %v2613, %v2637
        %v2668 = vadd.f32 %v2614, %v2637
        %v2669 = vadd.f32 %v2615, %v2637
        %v2670 = vadd.f32 %v2616, %v2637
        %v2671 = vadd.f32 %v2617, %v2637
        %v2672 = vadd.f32 %v2618, %v2637
        %v2673 = vadd.f32 %v2619, %v2637
        %v2674 = vadd.f32 %v2620, %v2637
        %v2675 = vadd.f32 %v2621, %v2637
        %v2676 = vadd.f32 %v2622, %v2637
        %v2677 = vadd.f32 %v2623, %v2637
        %v2678 = vadd.f32 %v2624, %v2637
        %v2679 = vadd.f32 %v2625, %v2637
        %v2680 = vadd.f32 %v2626, %v2637
        %v2681 = vadd.f32 %v2627, %v2637
        %v2682 = vadd.f32 %v2628, %v2637
        %v2683 = vadd.f32 %v2629, %v2637
        %v2684 = vadd.f32 %v2630, %v2637
        %v2685 = vadd.f32 %v2631, %v2637
        %v2686 = vadd.f32 %v2632, %v2637
        %v2687 = vadd.f32 %v2633, %v2637
        %v2688 = vadd.f32 %v2634, %v2637
        %v2689 = vmax.f32 %v2639, 0.0
        %v2690 = vmax.f32 %v2640, 0.0
        %v2691 = vmax.f32 %v2641, 0.0
        %v2692 = vmax.f32 %v2642, 0.0
        %v2693 = vmax.f32 %v2643, 0.0
        %v2694 = vmax.f32 %v2644, 0.0
        %v2695 = vmax.f32 %v2645, 0.0
        %v2696 = vmax.f32 %v2646, 0.0
        %v2697 = vmax.f32 %v2647, 0.0
        %v2698 = vmax.f32 %v2648, 0.0
        %v2699 = vmax.f32 %v2649, 0.0
        %v2700 = vmax.f32 %v2650, 0.0
        %v2701 = vmax.f32 %v2651, 0.0
        %v2702 = vmax.f32 %v2652, 0.0
        %v2703 = vmax.f32 %v2653, 0.0
        %v2704 = vmax.f32 %v2654, 0.0
        %v2705 = vmax.f32 %v2655, 0.0
        %v2706 = vmax.f32 %v2656, 0.0
        %v2707 = vmax.f32 %v2657, 0.0
        %v2708 = vmax.f32 %v2658, 0.0
        %v2709 = vmax.f32 %v2659, 0.0
        %v2710 = vmax.f32 %v2660, 0.0
        %v2711 = vmax.f32 %v2661, 0.0
        %v2712 = vmax.f32 %v2662, 0.0
        %v2713 = vmax.f32 %v2663, 0.0
        %v2714 = vmax.f32 %v2664, 0.0
        %v2715 = vmax.f32 %v2665, 0.0
        %v2716 = vmax.f32 %v2666, 0.0
        %v2717 = vmax.f32 %v2667, 0.0
        %v2718 = vmax.f32 %v2668, 0.0
        %v2719 = vmax.f32 %v2669, 0.0
        %v2720 = vmax.f32 %v2670, 0.0
        %v2721 = vmax.f32 %v2671, 0.0
        %v2722 = vmax.f32 %v2672, 0.0
        %v2723 = vmax.f32 %v2673, 0.0
        %v2724 = vmax.f32 %v2674, 0.0
        %v2725 = vmax.f32 %v2675, 0.0
        %v2726 = vmax.f32 %v2676, 0.0
        %v2727 = vmax.f32 %v2677, 0.0
        %v2728 = vmax.f32 %v2678, 0.0
        %v2729 = vmax.f32 %v2679, 0.0
        %v2730 = vmax.f32 %v2680, 0.0
        %v2731 = vmax.f32 %v2681, 0.0
        %v2732 = vmax.f32 %v2682, 0.0
        %v2733 = vmax.f32 %v2683, 0.0
        %v2734 = vmax.f32 %v2684, 0.0
        %v2735 = vmax.f32 %v2685, 0.0
        %v2736 = vmax.f32 %v2686, 0.0
        %v2737 = vmax.f32 %v2687, 0.0
        %v2738 = vmax.f32 %v2688, 0.0
        %vm2739 = vcmask 48128
        %2740 = vst.msk [vmem:[%s1003] sm:$0xff] %vm2739, %v2689
        %2741 = vst.msk [vmem:[%s1003 + $0x8] sm:$0xff] %vm2739, %v2690
        %2742 = vst.msk [vmem:[%s1003 + $0x10] sm:$0xff] %vm2739, %v2691
        %2743 = vst.msk [vmem:[%s1003 + $0x18] sm:$0xff] %vm2739, %v2692
        %2744 = vst.msk [vmem:[%s1003 + $0x20] sm:$0xff] %vm2739, %v2693
        %2745 = vst.msk [vmem:[%s1003 + $0x28] sm:$0xff] %vm2739, %v2694
        %2746 = vst.msk [vmem:[%s1003 + $0x30] sm:$0xff] %vm2739, %v2695
        %2747 = vst.msk [vmem:[%s1003 + $0x38] sm:$0xff] %vm2739, %v2696
        %2748 = vst.msk [vmem:[%s1003 + $0x40] sm:$0xff] %vm2739, %v2697
        %2749 = vst.msk [vmem:[%s1003 + $0x48] sm:$0xff] %vm2739, %v2698
        %2750 = vst.msk [vmem:[%s1003 + $0x50] sm:$0xff] %vm2739, %v2699
        %2751 = vst.msk [vmem:[%s1003 + $0x58] sm:$0xff] %vm2739, %v2700
        %2752 = vst.msk [vmem:[%s1003 + $0x60] sm:$0xff] %vm2739, %v2701
        %2753 = vst.msk [vmem:[%s1003 + $0x68] sm:$0xff] %vm2739, %v2702
        %2754 = vst.msk [vmem:[%s1003 + $0x70] sm:$0xff] %vm2739, %v2703
        %2755 = vst.msk [vmem:[%s1003 + $0x78] sm:$0xff] %vm2739, %v2704
        %2756 = vst.msk [vmem:[%s1003 + $0x80] sm:$0xff] %vm2739, %v2705
        %2757 = vst.msk [vmem:[%s1003 + $0x88] sm:$0xff] %vm2739, %v2706
        %2758 = vst.msk [vmem:[%s1003 + $0x90] sm:$0xff] %vm2739, %v2707
        %2759 = vst.msk [vmem:[%s1003 + $0x98] sm:$0xff] %vm2739, %v2708
        %2760 = vst.msk [vmem:[%s1003 + $0xa0] sm:$0xff] %vm2739, %v2709
        %2761 = vst.msk [vmem:[%s1003 + $0xa8] sm:$0xff] %vm2739, %v2710
        %2762 = vst.msk [vmem:[%s1003 + $0xb0] sm:$0xff] %vm2739, %v2711
        %2763 = vst.msk [vmem:[%s1003 + $0xb8] sm:$0xff] %vm2739, %v2712
        %2764 = vst.msk [vmem:[%s1003 + $0xc0] sm:$0xff] %vm2739, %v2713
        %2765 = vst.msk [vmem:[%s1003 + $0xc8] sm:$0xff] %vm2739, %v2714
        %2766 = vst.msk [vmem:[%s1003 + $0xd0] sm:$0xff] %vm2739, %v2715
        %2767 = vst.msk [vmem:[%s1003 + $0xd8] sm:$0xff] %vm2739, %v2716
        %2768 = vst.msk [vmem:[%s1003 + $0xe0] sm:$0xff] %vm2739, %v2717
        %2769 = vst.msk [vmem:[%s1003 + $0xe8] sm:$0xff] %vm2739, %v2718
        %2770 = vst.msk [vmem:[%s1003 + $0xf0] sm:$0xff] %vm2739, %v2719
        %2771 = vst.msk [vmem:[%s1003 + $0xf8] sm:$0xff] %vm2739, %v2720
        %2772 = vst.msk [vmem:[%s1003 + $0x100] sm:$0xff] %vm2739, %v2721
        %2773 = vst.msk [vmem:[%s1003 + $0x108] sm:$0xff] %vm2739, %v2722
        %2774 = vst.msk [vmem:[%s1003 + $0x110] sm:$0xff] %vm2739, %v2723
        %2775 = vst.msk [vmem:[%s1003 + $0x118] sm:$0xff] %vm2739, %v2724
        %2776 = vst.msk [vmem:[%s1003 + $0x120] sm:$0xff] %vm2739, %v2725
        %2777 = vst.msk [vmem:[%s1003 + $0x128] sm:$0xff] %vm2739, %v2726
        %2778 = vst.msk [vmem:[%s1003 + $0x130] sm:$0xff] %vm2739, %v2727
        %2779 = vst.msk [vmem:[%s1003 + $0x138] sm:$0xff] %vm2739, %v2728
        %2780 = vst.msk [vmem:[%s1003 + $0x140] sm:$0xff] %vm2739, %v2729
        %2781 = vst.msk [vmem:[%s1003 + $0x148] sm:$0xff] %vm2739, %v2730
        %2782 = vst.msk [vmem:[%s1003 + $0x150] sm:$0xff] %vm2739, %v2731
        %2783 = vst.msk [vmem:[%s1003 + $0x158] sm:$0xff] %vm2739, %v2732
        %2784 = vst.msk [vmem:[%s1003 + $0x160] sm:$0xff] %vm2739, %v2733
        %2785 = vst.msk [vmem:[%s1003 + $0x168] sm:$0xff] %vm2739, %v2734
        %2786 = vst.msk [vmem:[%s1003 + $0x170] sm:$0xff] %vm2739, %v2735
        %2787 = vst.msk [vmem:[%s1003 + $0x178] sm:$0xff] %vm2739, %v2736
        %2788 = vst.msk [vmem:[%s1003 + $0x180] sm:$0xff] %vm2739, %v2737
        %2789 = vst.msk [vmem:[%s1003 + $0x188] sm:$0xff] %vm2739, %v2738
        %s2790 = smul.u32 50, %s14
        %p2791 = scmp.lt.s32.totalorder %s2790, 99
        %s2792 = scalar_select %p2791, %s2790, 99
        %s2793 = smul.addr %s2792, 8
        %s2794 = scalar_lea.vmem %s3, %s2793
        // Predicated region
        $region71: #{tpu_custom_call.1} parent=65 // pred_check
          %p2795 = pneg %p100
        $region72: #{tpu_custom_call.1} parent=65 // pred_check_branch
          %2797 = sbr.rel (%p2795) target = $region74
        $region73: #{tpu_custom_call.1} parent=65 // pred_region
          %s2798 = smul.u32 50, %s14
        $region74: #{tpu_custom_call.1} parent=65 // pred_fallthru
          _
      $region66: #{tpu_custom_call.1} parent=5 // pred_fallthru
        _
      %p2799 = scmp.le.s32.totalorder 2, %s9
      // Predicated region
      $region75: #{tpu_custom_call.1} parent=5 // pred_check
        %p2800 = pneg %p2799
      $region76: #{tpu_custom_call.1} parent=5 // pred_check_branch
        %2802 = sbr.rel (%p2800) target = $region78
      $region77: #{tpu_custom_call.1} parent=5 // pred_region
        %s2803 = ssub.s32 %s9, 2
        // Predicated region
        $region79: #{tpu_custom_call.1} parent=77 // pred_check
          %p2804 = pneg %p106
        $region80: #{tpu_custom_call.1} parent=77 // pred_check_branch
          %2806 = sbr.rel (%p2804) target = $region82
        $region81: #{tpu_custom_call.1} parent=77 // pred_region
          %s2807 = smul.u32 50, %s15
          %p2808 = scmp.lt.s32.totalorder %s2807, 99
          %s2809 = scalar_select %p2808, %s2807, 99
          %s2810 = smul.addr %s2809, 8
          %s2811 = scalar_lea.vmem %s3, %s2810
        $region82: #{tpu_custom_call.1} parent=77 // pred_fallthru
          _
      $region78: #{tpu_custom_call.1} parent=5 // pred_fallthru
        _
    $region6: #{tpu_custom_call.1} parent=1 // loop_footer
      %s13 = sadd.s32 1, %s9
    $region7: #{tpu_custom_call.1} parent=1 // loop_footer_branch
      %8 = sbr.rel target = $region3
    $region8: #{tpu_custom_call.1} parent=1 // loop_exit
      _

</llo_original>
